<compile_context>
chip_gen: v6e
topology: v6e:2x2x1
jax: 0.10.0
libtpu: 0.0.40
codegen_flags: <defaults>
</compile_context>

<pallas_src>
import jax
import jax.numpy as jnp
import numpy as np
from jax import lax
from jax.experimental import pallas as pl
from jax.experimental.pallas import tpu as pltpu


def _round_up(x, m):
    return ((x + m - 1) // m) * m


# ----------------------------- kernels ------------------------------------- #

def lstm_recurrent_kernel(x_ref, wih_ref, whh_ref, b_ref, hlast_ref, xg_ref):
    """Single invocation: whole sequence in VMEM, fori_loop over time.

    x_ref   : (T*Bp, Fp)    time-major, batch/feature padded
    wih_ref : (Fp, 4*Hp)    W_ih^T, gate-block padded (each gate owns Hp lanes)
    whh_ref : (Hp, 4*Hp)    W_hh^T, gate-block padded
    b_ref   : (1, 4*Hp)     b_ih + b_hh, gate-block padded
    hlast_ref : (Bp, Hp)    output, last hidden state
    xg_ref  : (T*Bp, 4*Hp)  VMEM scratch: precomputed input projections
    """
    TB, _ = x_ref.shape
    Hp = whh_ref.shape[0]
    Bp = hlast_ref.shape[0]
    T = TB // Bp

    # One big MXU op: input projection for every time step at once.
    xg_ref[...] = jnp.dot(x_ref[...], wih_ref[...],
                          preferred_element_type=jnp.float32)

    def step(t, carry):
        h, c = carry
        row = pl.multiple_of(t * Bp, Bp)                       # sublane-aligned slice
        gates = (xg_ref[pl.ds(row, Bp), :]
                 + jnp.dot(h, whh_ref[...], preferred_element_type=jnp.float32)
                 + b_ref[...])                                 # (Bp, 4*Hp)
        # Lane-aligned gate views: each gate occupies a full Hp(=k*128)-lane block.
        i = jax.nn.sigmoid(gates[:, 0 * Hp:1 * Hp])
        f = jax.nn.sigmoid(gates[:, 1 * Hp:2 * Hp])
        g = jnp.tanh(gates[:, 2 * Hp:3 * Hp])
        o = jax.nn.sigmoid(gates[:, 3 * Hp:4 * Hp])
        c_new = f * c + i * g
        h_new = o * jnp.tanh(c_new)
        return h_new, c_new

    h0 = jnp.zeros((Bp, Hp), jnp.float32)
    c0 = jnp.zeros((Bp, Hp), jnp.float32)
    h_T, _ = lax.fori_loop(0, T, step, (h0, c0), unroll=(T <= 16))
    hlast_ref[...] = h_T


def fc_kernel(h_ref, wfc_ref, bfc_ref, out_ref):
    """out = h_last @ W_fc^T + b_fc, on the padded (lane-dense) layout."""
    out_ref[...] = (jnp.dot(h_ref[...], wfc_ref[...],
                            preferred_element_type=jnp.float32)
                    + bfc_ref[...]).astype(out_ref.dtype)


# ----------------------------- wrapper -------------------------------------- #

def _pad_params(params, Fp, Hp):
    """Scatter the real weights into gate-block-padded, lane/sublane-aligned layouts."""
    wih, whh, b, wfc, bfc = params
    F = wih.shape[0]
    H = whh.shape[0]
    wih_p = jnp.zeros((Fp, 4 * Hp), jnp.float32)
    whh_p = jnp.zeros((Hp, 4 * Hp), jnp.float32)
    b_p = jnp.zeros((1, 4 * Hp), jnp.float32)
    for g in range(4):  # PyTorch gate order i, f, g, o
        wih_p = wih_p.at[:F, g * Hp:g * Hp + H].set(wih[:, g * H:(g + 1) * H])
        whh_p = whh_p.at[:H, g * Hp:g * Hp + H].set(whh[:, g * H:(g + 1) * H])
        b_p = b_p.at[:, g * Hp:g * Hp + H].set(b[:, g * H:(g + 1) * H])
    wfc_p = jnp.zeros((Hp, Fp), jnp.float32).at[:H, :F].set(wfc)
    bfc_p = jnp.zeros((1, Fp), jnp.float32).at[:, :F].set(bfc)
    return wih_p, whh_p, b_p, wfc_p, bfc_p


def lstm_forward(x, params):
    """x: (B, T, F) float32 (batch_first, like the PyTorch module); returns (B, F)."""
    B, T, F = x.shape
    wih, whh, b, wfc, bfc = params
    H = whh.shape[0]

    Bp = _round_up(B, 8)      # f32 sublane
    Fp = _round_up(F, 128)    # lane
    Hp = _round_up(H, 128)    # lane (each gate block is lane-aligned)

    wih_p, whh_p, b_p, wfc_p, bfc_p = _pad_params(params, Fp, Hp)

    # time-major, pad batch & features, flatten (T, Bp) rows so the kernel can do
    # the input projection for all steps in a single matmul.
    x_tm = jnp.transpose(x, (1, 0, 2))                               # (T, B, F)
    x_tm = jnp.pad(x_tm, ((0, 0), (0, Bp - B), (0, Fp - F)))         # (T, Bp, Fp)
    x2d = x_tm.reshape(T * Bp, Fp)

    h_last = pl.pallas_call(
        lstm_recurrent_kernel,
        out_shape=jax.ShapeDtypeStruct((Bp, Hp), jnp.float32),
        scratch_shapes=[pltpu.VMEM((T * Bp, 4 * Hp), jnp.float32)],
        compiler_params=pltpu.CompilerParams(vmem_limit_bytes=32 * 1024 * 1024),
    )(x2d, wih_p, whh_p, b_p)

    # Final FC on the last hidden state only (== out[:, -1, :] in PyTorch),
    # as a tiny separate pallas_call with a lane-dense output slab.
    out_pad = pl.pallas_call(
        fc_kernel,
        out_shape=jax.ShapeDtypeStruct((Bp, Fp), jnp.float32),
        compiler_params=pltpu.CompilerParams(vmem_limit_bytes=32 * 1024 * 1024),
    )(h_last, wfc_p, bfc_p)

    return out_pad[:B, :F]


# ----------------------------- reference & init ----------------------------- #

def reference_forward(x, params):
    """Pure-JAX reference matching torch.nn.LSTM (1 layer, batch_first) + Linear."""
    wih, whh, b, wfc, bfc = params
    B, T, F = x.shape
    H = whh.shape[0]
    h = jnp.zeros((B, H), jnp.float32)
    c = jnp.zeros((B, H), jnp.float32)
    for t in range(T):
        gates = x[:, t, :] @ wih + h @ whh + b
        i = jax.nn.sigmoid(gates[:, :H])
        f = jax.nn.sigmoid(gates[:, H:2 * H])
        g = jnp.tanh(gates[:, 2 * H:3 * H])
        o = jax.nn.sigmoid(gates[:, 3 * H:])
        c = f * c + i * g
        h = o * jnp.tanh(c)
    return h @ wfc + bfc


def init_params(key, input_num_feats, hidden_size):
    """Deterministic synthetic init, uniform(-1/sqrt(H), 1/sqrt(H)) like PyTorch."""
    F, H = input_num_feats, hidden_size
    k = 1.0 / np.sqrt(H)
    ks = jax.random.split(key, 6)
    # Stored pre-transposed so kernels do x @ W directly.
    wih = jax.random.uniform(ks[0], (F, 4 * H), jnp.float32, -k, k)    # weight_ih_l0.T
    whh = jax.random.uniform(ks[1], (H, 4 * H), jnp.float32, -k, k)    # weight_hh_l0.T
    b = (jax.random.uniform(ks[2], (1, 4 * H), jnp.float32, -k, k)
         + jax.random.uniform(ks[3], (1, 4 * H), jnp.float32, -k, k))  # b_ih + b_hh
    wfc = jax.random.uniform(ks[4], (H, F), jnp.float32, -k, k)        # fc.weight.T
    bfc = jax.random.uniform(ks[5], (1, F), jnp.float32, -k, k)        # fc.bias
    return (wih, whh, b, wfc, bfc)


if __name__ == "__main__":
    B, T, F, H = 2, 8, 4, 32
    key = jax.random.PRNGKey(0)
    kx, kp = jax.random.split(key)
    x = jax.random.normal(kx, (B, T, F), jnp.float32)
    params = init_params(kp, F, H)

    out = lstm_forward(x, params)
    out = jax.block_until_ready(out)

    ref = reference_forward(x, params)
    np.testing.assert_allclose(np.asarray(out), np.asarray(ref), rtol=1e-5, atol=1e-5)

    print("KERNEL_OK")
</pallas_src>

<mosaic_0001>
module attributes {stable_mosaic.version = 11 : i64} {
  func.func @lstm_recurrent_kernel(%arg0: memref<64x128xf32, #tpu.memory_space<vmem>>, %arg1: memref<128x512xf32, #tpu.memory_space<vmem>>, %arg2: memref<128x512xf32, #tpu.memory_space<vmem>>, %arg3: memref<1x512xf32, #tpu.memory_space<vmem>>, %arg4: memref<8x128xf32, #tpu.memory_space<vmem>>, %arg5: memref<64x512xf32, #tpu.memory_space<vmem>>) attributes {dimension_semantics = [], scalar_prefetch = 0 : i64, scratch_operands = 1 : i64, tpu.core_type = #tpu.core_type<tc>} {
    %c0 = arith.constant 0 : index
    %c0_0 = arith.constant 0 : index
    %0 = vector.load %arg0[%c0, %c0_0] : memref<64x128xf32, #tpu.memory_space<vmem>>, vector<64x128xf32>
    %c0_1 = arith.constant 0 : index
    %c0_2 = arith.constant 0 : index
    %1 = vector.load %arg1[%c0_1, %c0_2] : memref<128x512xf32, #tpu.memory_space<vmem>>, vector<128x512xf32>
    %cst = arith.constant dense<0.000000e+00> : vector<64x512xf32>
    %2 = tpu.matmul %0, %1, %cst {dimension_numbers = #tpu.dot_dimension_numbers<[1], [0], [0], [1], [0, 0, 1, 1], [], []>} : vector<64x128xf32>, vector<128x512xf32>, vector<64x512xf32> -> vector<64x512xf32>
    %c0_3 = arith.constant 0 : index
    %c0_4 = arith.constant 0 : index
    %3 = vector.load %arg5[%c0_3, %c0_4] : memref<64x512xf32, #tpu.memory_space<vmem>>, vector<64x512xf32>
    tpu.vector_store %arg5[%c0_3, %c0_4], %2 {strides = array<i32>} : memref<64x512xf32, #tpu.memory_space<vmem>>, vector<64x512xf32>,
    %cst_5 = arith.constant 0.000000e+00 : f32
    %4 = vector.broadcast %cst_5 : f32 to vector<8x128xf32>
    %cst_6 = arith.constant 0.000000e+00 : f32
    %5 = vector.broadcast %cst_6 : f32 to vector<8x128xf32>
    %c0_i32 = arith.constant 0 : i32
    %c8_i32 = arith.constant 8 : i32
    %6 = arith.muli %c0_i32, %c8_i32 : i32
    %7 = tpu.assume_multiple %6, 8 : i32
    %8 = arith.index_cast %7 : i32 to index
    %c0_7 = arith.constant 0 : index
    %9 = vector.load %arg5[%8, %c0_7] : memref<64x512xf32, #tpu.memory_space<vmem>>, vector<8x512xf32>
    %c0_8 = arith.constant 0 : index
    %c0_9 = arith.constant 0 : index
    %10 = vector.load %arg2[%c0_8, %c0_9] : memref<128x512xf32, #tpu.memory_space<vmem>>, vector<128x512xf32>
    %cst_10 = arith.constant dense<0.000000e+00> : vector<8x512xf32>
    %11 = tpu.matmul %4, %10, %cst_10 {dimension_numbers = #tpu.dot_dimension_numbers<[1], [0], [0], [1], [0, 0, 1, 1], [], []>} : vector<8x128xf32>, vector<128x512xf32>, vector<8x512xf32> -> vector<8x512xf32>
    %12 = arith.addf %9, %11 : vector<8x512xf32>
    %c0_11 = arith.constant 0 : index
    %c0_12 = arith.constant 0 : index
    %13 = vector.load %arg3[%c0_11, %c0_12] : memref<1x512xf32, #tpu.memory_space<vmem>>, vector<1x512xf32>
    %14 = vector.broadcast %13 : vector<1x512xf32> to vector<8x512xf32>
    %15 = arith.addf %12, %14 : vector<8x512xf32>
    %16 = vector.extract_strided_slice %15 {offsets = [0, 0], sizes = [8, 128], strides = [1, 1]} : vector<8x512xf32> to vector<8x128xf32>
    %17 = arith.negf %16 : vector<8x128xf32>
    %18 = math.exp %17 : vector<8x128xf32>
    %cst_13 = arith.constant 1.000000e+00 : f32
    %19 = vector.broadcast %cst_13 : f32 to vector<8x128xf32>
    %20 = arith.addf %19, %18 : vector<8x128xf32>
    %21 = arith.divf %19, %20 : vector<8x128xf32>
    %22 = vector.extract_strided_slice %15 {offsets = [0, 128], sizes = [8, 128], strides = [1, 1]} : vector<8x512xf32> to vector<8x128xf32>
    %23 = arith.negf %22 : vector<8x128xf32>
    %24 = math.exp %23 : vector<8x128xf32>
    %cst_14 = arith.constant 1.000000e+00 : f32
    %25 = vector.broadcast %cst_14 : f32 to vector<8x128xf32>
    %26 = arith.addf %25, %24 : vector<8x128xf32>
    %27 = arith.divf %25, %26 : vector<8x128xf32>
    %28 = vector.extract_strided_slice %15 {offsets = [0, 256], sizes = [8, 128], strides = [1, 1]} : vector<8x512xf32> to vector<8x128xf32>
    %29 = math.tanh %28 : vector<8x128xf32>
    %30 = vector.extract_strided_slice %15 {offsets = [0, 384], sizes = [8, 128], strides = [1, 1]} : vector<8x512xf32> to vector<8x128xf32>
    %31 = arith.negf %30 : vector<8x128xf32>
    %32 = math.exp %31 : vector<8x128xf32>
    %cst_15 = arith.constant 1.000000e+00 : f32
    %33 = vector.broadcast %cst_15 : f32 to vector<8x128xf32>
    %34 = arith.addf %33, %32 : vector<8x128xf32>
    %35 = arith.divf %33, %34 : vector<8x128xf32>
    %36 = arith.mulf %27, %5 : vector<8x128xf32>
    %37 = arith.mulf %21, %29 : vector<8x128xf32>
    %38 = arith.addf %36, %37 : vector<8x128xf32>
    %39 = math.tanh %38 : vector<8x128xf32>
    %40 = arith.mulf %35, %39 : vector<8x128xf32>
    %c1_i32 = arith.constant 1 : i32
    %c8_i32_16 = arith.constant 8 : i32
    %41 = arith.muli %c1_i32, %c8_i32_16 : i32
    %42 = tpu.assume_multiple %41, 8 : i32
    %43 = arith.index_cast %42 : i32 to index
    %c0_17 = arith.constant 0 : index
    %44 = vector.load %arg5[%43, %c0_17] : memref<64x512xf32, #tpu.memory_space<vmem>>, vector<8x512xf32>
    %c0_18 = arith.constant 0 : index
    %c0_19 = arith.constant 0 : index
    %45 = vector.load %arg2[%c0_18, %c0_19] : memref<128x512xf32, #tpu.memory_space<vmem>>, vector<128x512xf32>
    %cst_20 = arith.constant dense<0.000000e+00> : vector<8x512xf32>
    %46 = tpu.matmul %40, %45, %cst_20 {dimension_numbers = #tpu.dot_dimension_numbers<[1], [0], [0], [1], [0, 0, 1, 1], [], []>} : vector<8x128xf32>, vector<128x512xf32>, vector<8x512xf32> -> vector<8x512xf32>
    %47 = arith.addf %44, %46 : vector<8x512xf32>
    %c0_21 = arith.constant 0 : index
    %c0_22 = arith.constant 0 : index
    %48 = vector.load %arg3[%c0_21, %c0_22] : memref<1x512xf32, #tpu.memory_space<vmem>>, vector<1x512xf32>
    %49 = vector.broadcast %48 : vector<1x512xf32> to vector<8x512xf32>
    %50 = arith.addf %47, %49 : vector<8x512xf32>
    %51 = vector.extract_strided_slice %50 {offsets = [0, 0], sizes = [8, 128], strides = [1, 1]} : vector<8x512xf32> to vector<8x128xf32>
    %52 = arith.negf %51 : vector<8x128xf32>
    %53 = math.exp %52 : vector<8x128xf32>
    %cst_23 = arith.constant 1.000000e+00 : f32
    %54 = vector.broadcast %cst_23 : f32 to vector<8x128xf32>
    %55 = arith.addf %54, %53 : vector<8x128xf32>
    %56 = arith.divf %54, %55 : vector<8x128xf32>
    %57 = vector.extract_strided_slice %50 {offsets = [0, 128], sizes = [8, 128], strides = [1, 1]} : vector<8x512xf32> to vector<8x128xf32>
    %58 = arith.negf %57 : vector<8x128xf32>
    %59 = math.exp %58 : vector<8x128xf32>
    %cst_24 = arith.constant 1.000000e+00 : f32
    %60 = vector.broadcast %cst_24 : f32 to vector<8x128xf32>
    %61 = arith.addf %60, %59 : vector<8x128xf32>
    %62 = arith.divf %60, %61 : vector<8x128xf32>
    %63 = vector.extract_strided_slice %50 {offsets = [0, 256], sizes = [8, 128], strides = [1, 1]} : vector<8x512xf32> to vector<8x128xf32>
    %64 = math.tanh %63 : vector<8x128xf32>
    %65 = vector.extract_strided_slice %50 {offsets = [0, 384], sizes = [8, 128], strides = [1, 1]} : vector<8x512xf32> to vector<8x128xf32>
    %66 = arith.negf %65 : vector<8x128xf32>
    %67 = math.exp %66 : vector<8x128xf32>
    %cst_25 = arith.constant 1.000000e+00 : f32
    %68 = vector.broadcast %cst_25 : f32 to vector<8x128xf32>
    %69 = arith.addf %68, %67 : vector<8x128xf32>
    %70 = arith.divf %68, %69 : vector<8x128xf32>
    %71 = arith.mulf %62, %38 : vector<8x128xf32>
    %72 = arith.mulf %56, %64 : vector<8x128xf32>
    %73 = arith.addf %71, %72 : vector<8x128xf32>
    %74 = math.tanh %73 : vector<8x128xf32>
    %75 = arith.mulf %70, %74 : vector<8x128xf32>
    %c2_i32 = arith.constant 2 : i32
    %c8_i32_26 = arith.constant 8 : i32
    %76 = arith.muli %c2_i32, %c8_i32_26 : i32
    %77 = tpu.assume_multiple %76, 8 : i32
    %78 = arith.index_cast %77 : i32 to index
    %c0_27 = arith.constant 0 : index
    %79 = vector.load %arg5[%78, %c0_27] : memref<64x512xf32, #tpu.memory_space<vmem>>, vector<8x512xf32>
    %c0_28 = arith.constant 0 : index
    %c0_29 = arith.constant 0 : index
    %80 = vector.load %arg2[%c0_28, %c0_29] : memref<128x512xf32, #tpu.memory_space<vmem>>, vector<128x512xf32>
    %cst_30 = arith.constant dense<0.000000e+00> : vector<8x512xf32>
    %81 = tpu.matmul %75, %80, %cst_30 {dimension_numbers = #tpu.dot_dimension_numbers<[1], [0], [0], [1], [0, 0, 1, 1], [], []>} : vector<8x128xf32>, vector<128x512xf32>, vector<8x512xf32> -> vector<8x512xf32>
    %82 = arith.addf %79, %81 : vector<8x512xf32>
    %c0_31 = arith.constant 0 : index
    %c0_32 = arith.constant 0 : index
    %83 = vector.load %arg3[%c0_31, %c0_32] : memref<1x512xf32, #tpu.memory_space<vmem>>, vector<1x512xf32>
    %84 = vector.broadcast %83 : vector<1x512xf32> to vector<8x512xf32>
    %85 = arith.addf %82, %84 : vector<8x512xf32>
    %86 = vector.extract_strided_slice %85 {offsets = [0, 0], sizes = [8, 128], strides = [1, 1]} : vector<8x512xf32> to vector<8x128xf32>
    %87 = arith.negf %86 : vector<8x128xf32>
    %88 = math.exp %87 : vector<8x128xf32>
    %cst_33 = arith.constant 1.000000e+00 : f32
    %89 = vector.broadcast %cst_33 : f32 to vector<8x128xf32>
    %90 = arith.addf %89, %88 : vector<8x128xf32>
    %91 = arith.divf %89, %90 : vector<8x128xf32>
    %92 = vector.extract_strided_slice %85 {offsets = [0, 128], sizes = [8, 128], strides = [1, 1]} : vector<8x512xf32> to vector<8x128xf32>
    %93 = arith.negf %92 : vector<8x128xf32>
    %94 = math.exp %93 : vector<8x128xf32>
    %cst_34 = arith.constant 1.000000e+00 : f32
    %95 = vector.broadcast %cst_34 : f32 to vector<8x128xf32>
    %96 = arith.addf %95, %94 : vector<8x128xf32>
    %97 = arith.divf %95, %96 : vector<8x128xf32>
    %98 = vector.extract_strided_slice %85 {offsets = [0, 256], sizes = [8, 128], strides = [1, 1]} : vector<8x512xf32> to vector<8x128xf32>
    %99 = math.tanh %98 : vector<8x128xf32>
    %100 = vector.extract_strided_slice %85 {offsets = [0, 384], sizes = [8, 128], strides = [1, 1]} : vector<8x512xf32> to vector<8x128xf32>
    %101 = arith.negf %100 : vector<8x128xf32>
    %102 = math.exp %101 : vector<8x128xf32>
    %cst_35 = arith.constant 1.000000e+00 : f32
    %103 = vector.broadcast %cst_35 : f32 to vector<8x128xf32>
    %104 = arith.addf %103, %102 : vector<8x128xf32>
    %105 = arith.divf %103, %104 : vector<8x128xf32>
    %106 = arith.mulf %97, %73 : vector<8x128xf32>
    %107 = arith.mulf %91, %99 : vector<8x128xf32>
    %108 = arith.addf %106, %107 : vector<8x128xf32>
    %109 = math.tanh %108 : vector<8x128xf32>
    %110 = arith.mulf %105, %109 : vector<8x128xf32>
    %c3_i32 = arith.constant 3 : i32
    %c8_i32_36 = arith.constant 8 : i32
    %111 = arith.muli %c3_i32, %c8_i32_36 : i32
    %112 = tpu.assume_multiple %111, 8 : i32
    %113 = arith.index_cast %112 : i32 to index
    %c0_37 = arith.constant 0 : index
    %114 = vector.load %arg5[%113, %c0_37] : memref<64x512xf32, #tpu.memory_space<vmem>>, vector<8x512xf32>
    %c0_38 = arith.constant 0 : index
    %c0_39 = arith.constant 0 : index
    %115 = vector.load %arg2[%c0_38, %c0_39] : memref<128x512xf32, #tpu.memory_space<vmem>>, vector<128x512xf32>
    %cst_40 = arith.constant dense<0.000000e+00> : vector<8x512xf32>
    %116 = tpu.matmul %110, %115, %cst_40 {dimension_numbers = #tpu.dot_dimension_numbers<[1], [0], [0], [1], [0, 0, 1, 1], [], []>} : vector<8x128xf32>, vector<128x512xf32>, vector<8x512xf32> -> vector<8x512xf32>
    %117 = arith.addf %114, %116 : vector<8x512xf32>
    %c0_41 = arith.constant 0 : index
    %c0_42 = arith.constant 0 : index
    %118 = vector.load %arg3[%c0_41, %c0_42] : memref<1x512xf32, #tpu.memory_space<vmem>>, vector<1x512xf32>
    %119 = vector.broadcast %118 : vector<1x512xf32> to vector<8x512xf32>
    %120 = arith.addf %117, %119 : vector<8x512xf32>
    %121 = vector.extract_strided_slice %120 {offsets = [0, 0], sizes = [8, 128], strides = [1, 1]} : vector<8x512xf32> to vector<8x128xf32>
    %122 = arith.negf %121 : vector<8x128xf32>
    %123 = math.exp %122 : vector<8x128xf32>
    %cst_43 = arith.constant 1.000000e+00 : f32
    %124 = vector.broadcast %cst_43 : f32 to vector<8x128xf32>
    %125 = arith.addf %124, %123 : vector<8x128xf32>
    %126 = arith.divf %124, %125 : vector<8x128xf32>
    %127 = vector.extract_strided_slice %120 {offsets = [0, 128], sizes = [8, 128], strides = [1, 1]} : vector<8x512xf32> to vector<8x128xf32>
    %128 = arith.negf %127 : vector<8x128xf32>
    %129 = math.exp %128 : vector<8x128xf32>
    %cst_44 = arith.constant 1.000000e+00 : f32
    %130 = vector.broadcast %cst_44 : f32 to vector<8x128xf32>
    %131 = arith.addf %130, %129 : vector<8x128xf32>
    %132 = arith.divf %130, %131 : vector<8x128xf32>
    %133 = vector.extract_strided_slice %120 {offsets = [0, 256], sizes = [8, 128], strides = [1, 1]} : vector<8x512xf32> to vector<8x128xf32>
    %134 = math.tanh %133 : vector<8x128xf32>
    %135 = vector.extract_strided_slice %120 {offsets = [0, 384], sizes = [8, 128], strides = [1, 1]} : vector<8x512xf32> to vector<8x128xf32>
    %136 = arith.negf %135 : vector<8x128xf32>
    %137 = math.exp %136 : vector<8x128xf32>
    %cst_45 = arith.constant 1.000000e+00 : f32
    %138 = vector.broadcast %cst_45 : f32 to vector<8x128xf32>
    %139 = arith.addf %138, %137 : vector<8x128xf32>
    %140 = arith.divf %138, %139 : vector<8x128xf32>
    %141 = arith.mulf %132, %108 : vector<8x128xf32>
    %142 = arith.mulf %126, %134 : vector<8x128xf32>
    %143 = arith.addf %141, %142 : vector<8x128xf32>
    %144 = math.tanh %143 : vector<8x128xf32>
    %145 = arith.mulf %140, %144 : vector<8x128xf32>
    %c4_i32 = arith.constant 4 : i32
    %c8_i32_46 = arith.constant 8 : i32
    %146 = arith.muli %c4_i32, %c8_i32_46 : i32
    %147 = tpu.assume_multiple %146, 8 : i32
    %148 = arith.index_cast %147 : i32 to index
    %c0_47 = arith.constant 0 : index
    %149 = vector.load %arg5[%148, %c0_47] : memref<64x512xf32, #tpu.memory_space<vmem>>, vector<8x512xf32>
    %c0_48 = arith.constant 0 : index
    %c0_49 = arith.constant 0 : index
    %150 = vector.load %arg2[%c0_48, %c0_49] : memref<128x512xf32, #tpu.memory_space<vmem>>, vector<128x512xf32>
    %cst_50 = arith.constant dense<0.000000e+00> : vector<8x512xf32>
    %151 = tpu.matmul %145, %150, %cst_50 {dimension_numbers = #tpu.dot_dimension_numbers<[1], [0], [0], [1], [0, 0, 1, 1], [], []>} : vector<8x128xf32>, vector<128x512xf32>, vector<8x512xf32> -> vector<8x512xf32>
    %152 = arith.addf %149, %151 : vector<8x512xf32>
    %c0_51 = arith.constant 0 : index
    %c0_52 = arith.constant 0 : index
    %153 = vector.load %arg3[%c0_51, %c0_52] : memref<1x512xf32, #tpu.memory_space<vmem>>, vector<1x512xf32>
    %154 = vector.broadcast %153 : vector<1x512xf32> to vector<8x512xf32>
    %155 = arith.addf %152, %154 : vector<8x512xf32>
    %156 = vector.extract_strided_slice %155 {offsets = [0, 0], sizes = [8, 128], strides = [1, 1]} : vector<8x512xf32> to vector<8x128xf32>
    %157 = arith.negf %156 : vector<8x128xf32>
    %158 = math.exp %157 : vector<8x128xf32>
    %cst_53 = arith.constant 1.000000e+00 : f32
    %159 = vector.broadcast %cst_53 : f32 to vector<8x128xf32>
    %160 = arith.addf %159, %158 : vector<8x128xf32>
    %161 = arith.divf %159, %160 : vector<8x128xf32>
    %162 = vector.extract_strided_slice %155 {offsets = [0, 128], sizes = [8, 128], strides = [1, 1]} : vector<8x512xf32> to vector<8x128xf32>
    %163 = arith.negf %162 : vector<8x128xf32>
    %164 = math.exp %163 : vector<8x128xf32>
    %cst_54 = arith.constant 1.000000e+00 : f32
    %165 = vector.broadcast %cst_54 : f32 to vector<8x128xf32>
    %166 = arith.addf %165, %164 : vector<8x128xf32>
    %167 = arith.divf %165, %166 : vector<8x128xf32>
    %168 = vector.extract_strided_slice %155 {offsets = [0, 256], sizes = [8, 128], strides = [1, 1]} : vector<8x512xf32> to vector<8x128xf32>
    %169 = math.tanh %168 : vector<8x128xf32>
    %170 = vector.extract_strided_slice %155 {offsets = [0, 384], sizes = [8, 128], strides = [1, 1]} : vector<8x512xf32> to vector<8x128xf32>
    %171 = arith.negf %170 : vector<8x128xf32>
    %172 = math.exp %171 : vector<8x128xf32>
    %cst_55 = arith.constant 1.000000e+00 : f32
    %173 = vector.broadcast %cst_55 : f32 to vector<8x128xf32>
    %174 = arith.addf %173, %172 : vector<8x128xf32>
    %175 = arith.divf %173, %174 : vector<8x128xf32>
    %176 = arith.mulf %167, %143 : vector<8x128xf32>
    %177 = arith.mulf %161, %169 : vector<8x128xf32>
    %178 = arith.addf %176, %177 : vector<8x128xf32>
    %179 = math.tanh %178 : vector<8x128xf32>
    %180 = arith.mulf %175, %179 : vector<8x128xf32>
    %c5_i32 = arith.constant 5 : i32
    %c8_i32_56 = arith.constant 8 : i32
    %181 = arith.muli %c5_i32, %c8_i32_56 : i32
    %182 = tpu.assume_multiple %181, 8 : i32
    %183 = arith.index_cast %182 : i32 to index
    %c0_57 = arith.constant 0 : index
    %184 = vector.load %arg5[%183, %c0_57] : memref<64x512xf32, #tpu.memory_space<vmem>>, vector<8x512xf32>
    %c0_58 = arith.constant 0 : index
    %c0_59 = arith.constant 0 : index
    %185 = vector.load %arg2[%c0_58, %c0_59] : memref<128x512xf32, #tpu.memory_space<vmem>>, vector<128x512xf32>
    %cst_60 = arith.constant dense<0.000000e+00> : vector<8x512xf32>
    %186 = tpu.matmul %180, %185, %cst_60 {dimension_numbers = #tpu.dot_dimension_numbers<[1], [0], [0], [1], [0, 0, 1, 1], [], []>} : vector<8x128xf32>, vector<128x512xf32>, vector<8x512xf32> -> vector<8x512xf32>
    %187 = arith.addf %184, %186 : vector<8x512xf32>
    %c0_61 = arith.constant 0 : index
    %c0_62 = arith.constant 0 : index
    %188 = vector.load %arg3[%c0_61, %c0_62] : memref<1x512xf32, #tpu.memory_space<vmem>>, vector<1x512xf32>
    %189 = vector.broadcast %188 : vector<1x512xf32> to vector<8x512xf32>
    %190 = arith.addf %187, %189 : vector<8x512xf32>
    %191 = vector.extract_strided_slice %190 {offsets = [0, 0], sizes = [8, 128], strides = [1, 1]} : vector<8x512xf32> to vector<8x128xf32>
    %192 = arith.negf %191 : vector<8x128xf32>
    %193 = math.exp %192 : vector<8x128xf32>
    %cst_63 = arith.constant 1.000000e+00 : f32
    %194 = vector.broadcast %cst_63 : f32 to vector<8x128xf32>
    %195 = arith.addf %194, %193 : vector<8x128xf32>
    %196 = arith.divf %194, %195 : vector<8x128xf32>
    %197 = vector.extract_strided_slice %190 {offsets = [0, 128], sizes = [8, 128], strides = [1, 1]} : vector<8x512xf32> to vector<8x128xf32>
    %198 = arith.negf %197 : vector<8x128xf32>
    %199 = math.exp %198 : vector<8x128xf32>
    %cst_64 = arith.constant 1.000000e+00 : f32
    %200 = vector.broadcast %cst_64 : f32 to vector<8x128xf32>
    %201 = arith.addf %200, %199 : vector<8x128xf32>
    %202 = arith.divf %200, %201 : vector<8x128xf32>
    %203 = vector.extract_strided_slice %190 {offsets = [0, 256], sizes = [8, 128], strides = [1, 1]} : vector<8x512xf32> to vector<8x128xf32>
    %204 = math.tanh %203 : vector<8x128xf32>
    %205 = vector.extract_strided_slice %190 {offsets = [0, 384], sizes = [8, 128], strides = [1, 1]} : vector<8x512xf32> to vector<8x128xf32>
    %206 = arith.negf %205 : vector<8x128xf32>
    %207 = math.exp %206 : vector<8x128xf32>
    %cst_65 = arith.constant 1.000000e+00 : f32
    %208 = vector.broadcast %cst_65 : f32 to vector<8x128xf32>
    %209 = arith.addf %208, %207 : vector<8x128xf32>
    %210 = arith.divf %208, %209 : vector<8x128xf32>
    %211 = arith.mulf %202, %178 : vector<8x128xf32>
    %212 = arith.mulf %196, %204 : vector<8x128xf32>
    %213 = arith.addf %211, %212 : vector<8x128xf32>
    %214 = math.tanh %213 : vector<8x128xf32>
    %215 = arith.mulf %210, %214 : vector<8x128xf32>
    %c6_i32 = arith.constant 6 : i32
    %c8_i32_66 = arith.constant 8 : i32
    %216 = arith.muli %c6_i32, %c8_i32_66 : i32
    %217 = tpu.assume_multiple %216, 8 : i32
    %218 = arith.index_cast %217 : i32 to index
    %c0_67 = arith.constant 0 : index
    %219 = vector.load %arg5[%218, %c0_67] : memref<64x512xf32, #tpu.memory_space<vmem>>, vector<8x512xf32>
    %c0_68 = arith.constant 0 : index
    %c0_69 = arith.constant 0 : index
    %220 = vector.load %arg2[%c0_68, %c0_69] : memref<128x512xf32, #tpu.memory_space<vmem>>, vector<128x512xf32>
    %cst_70 = arith.constant dense<0.000000e+00> : vector<8x512xf32>
    %221 = tpu.matmul %215, %220, %cst_70 {dimension_numbers = #tpu.dot_dimension_numbers<[1], [0], [0], [1], [0, 0, 1, 1], [], []>} : vector<8x128xf32>, vector<128x512xf32>, vector<8x512xf32> -> vector<8x512xf32>
    %222 = arith.addf %219, %221 : vector<8x512xf32>
    %c0_71 = arith.constant 0 : index
    %c0_72 = arith.constant 0 : index
    %223 = vector.load %arg3[%c0_71, %c0_72] : memref<1x512xf32, #tpu.memory_space<vmem>>, vector<1x512xf32>
    %224 = vector.broadcast %223 : vector<1x512xf32> to vector<8x512xf32>
    %225 = arith.addf %222, %224 : vector<8x512xf32>
    %226 = vector.extract_strided_slice %225 {offsets = [0, 0], sizes = [8, 128], strides = [1, 1]} : vector<8x512xf32> to vector<8x128xf32>
    %227 = arith.negf %226 : vector<8x128xf32>
    %228 = math.exp %227 : vector<8x128xf32>
    %cst_73 = arith.constant 1.000000e+00 : f32
    %229 = vector.broadcast %cst_73 : f32 to vector<8x128xf32>
    %230 = arith.addf %229, %228 : vector<8x128xf32>
    %231 = arith.divf %229, %230 : vector<8x128xf32>
    %232 = vector.extract_strided_slice %225 {offsets = [0, 128], sizes = [8, 128], strides = [1, 1]} : vector<8x512xf32> to vector<8x128xf32>
    %233 = arith.negf %232 : vector<8x128xf32>
    %234 = math.exp %233 : vector<8x128xf32>
    %cst_74 = arith.constant 1.000000e+00 : f32
    %235 = vector.broadcast %cst_74 : f32 to vector<8x128xf32>
    %236 = arith.addf %235, %234 : vector<8x128xf32>
    %237 = arith.divf %235, %236 : vector<8x128xf32>
    %238 = vector.extract_strided_slice %225 {offsets = [0, 256], sizes = [8, 128], strides = [1, 1]} : vector<8x512xf32> to vector<8x128xf32>
    %239 = math.tanh %238 : vector<8x128xf32>
    %240 = vector.extract_strided_slice %225 {offsets = [0, 384], sizes = [8, 128], strides = [1, 1]} : vector<8x512xf32> to vector<8x128xf32>
    %241 = arith.negf %240 : vector<8x128xf32>
    %242 = math.exp %241 : vector<8x128xf32>
    %cst_75 = arith.constant 1.000000e+00 : f32
    %243 = vector.broadcast %cst_75 : f32 to vector<8x128xf32>
    %244 = arith.addf %243, %242 : vector<8x128xf32>
    %245 = arith.divf %243, %244 : vector<8x128xf32>
    %246 = arith.mulf %237, %213 : vector<8x128xf32>
    %247 = arith.mulf %231, %239 : vector<8x128xf32>
    %248 = arith.addf %246, %247 : vector<8x128xf32>
    %249 = math.tanh %248 : vector<8x128xf32>
    %250 = arith.mulf %245, %249 : vector<8x128xf32>
    %c7_i32 = arith.constant 7 : i32
    %c8_i32_76 = arith.constant 8 : i32
    %251 = arith.muli %c7_i32, %c8_i32_76 : i32
    %252 = tpu.assume_multiple %251, 8 : i32
    %253 = arith.index_cast %252 : i32 to index
    %c0_77 = arith.constant 0 : index
    %254 = vector.load %arg5[%253, %c0_77] : memref<64x512xf32, #tpu.memory_space<vmem>>, vector<8x512xf32>
    %c0_78 = arith.constant 0 : index
    %c0_79 = arith.constant 0 : index
    %255 = vector.load %arg2[%c0_78, %c0_79] : memref<128x512xf32, #tpu.memory_space<vmem>>, vector<128x512xf32>
    %cst_80 = arith.constant dense<0.000000e+00> : vector<8x512xf32>
    %256 = tpu.matmul %250, %255, %cst_80 {dimension_numbers = #tpu.dot_dimension_numbers<[1], [0], [0], [1], [0, 0, 1, 1], [], []>} : vector<8x128xf32>, vector<128x512xf32>, vector<8x512xf32> -> vector<8x512xf32>
    %257 = arith.addf %254, %256 : vector<8x512xf32>
    %c0_81 = arith.constant 0 : index
    %c0_82 = arith.constant 0 : index
    %258 = vector.load %arg3[%c0_81, %c0_82] : memref<1x512xf32, #tpu.memory_space<vmem>>, vector<1x512xf32>
    %259 = vector.broadcast %258 : vector<1x512xf32> to vector<8x512xf32>
    %260 = arith.addf %257, %259 : vector<8x512xf32>
    %261 = vector.extract_strided_slice %260 {offsets = [0, 0], sizes = [8, 128], strides = [1, 1]} : vector<8x512xf32> to vector<8x128xf32>
    %262 = arith.negf %261 : vector<8x128xf32>
    %263 = math.exp %262 : vector<8x128xf32>
    %cst_83 = arith.constant 1.000000e+00 : f32
    %264 = vector.broadcast %cst_83 : f32 to vector<8x128xf32>
    %265 = arith.addf %264, %263 : vector<8x128xf32>
    %266 = arith.divf %264, %265 : vector<8x128xf32>
    %267 = vector.extract_strided_slice %260 {offsets = [0, 128], sizes = [8, 128], strides = [1, 1]} : vector<8x512xf32> to vector<8x128xf32>
    %268 = arith.negf %267 : vector<8x128xf32>
    %269 = math.exp %268 : vector<8x128xf32>
    %cst_84 = arith.constant 1.000000e+00 : f32
    %270 = vector.broadcast %cst_84 : f32 to vector<8x128xf32>
    %271 = arith.addf %270, %269 : vector<8x128xf32>
    %272 = arith.divf %270, %271 : vector<8x128xf32>
    %273 = vector.extract_strided_slice %260 {offsets = [0, 256], sizes = [8, 128], strides = [1, 1]} : vector<8x512xf32> to vector<8x128xf32>
    %274 = math.tanh %273 : vector<8x128xf32>
    %275 = vector.extract_strided_slice %260 {offsets = [0, 384], sizes = [8, 128], strides = [1, 1]} : vector<8x512xf32> to vector<8x128xf32>
    %276 = arith.negf %275 : vector<8x128xf32>
    %277 = math.exp %276 : vector<8x128xf32>
    %cst_85 = arith.constant 1.000000e+00 : f32
    %278 = vector.broadcast %cst_85 : f32 to vector<8x128xf32>
    %279 = arith.addf %278, %277 : vector<8x128xf32>
    %280 = arith.divf %278, %279 : vector<8x128xf32>
    %281 = arith.mulf %272, %248 : vector<8x128xf32>
    %282 = arith.mulf %266, %274 : vector<8x128xf32>
    %283 = arith.addf %281, %282 : vector<8x128xf32>
    %284 = math.tanh %283 : vector<8x128xf32>
    %285 = arith.mulf %280, %284 : vector<8x128xf32>
    %c8_i32_86 = arith.constant 8 : i32
    %c0_87 = arith.constant 0 : index
    %c0_88 = arith.constant 0 : index
    %286 = vector.load %arg4[%c0_87, %c0_88] : memref<8x128xf32, #tpu.memory_space<vmem>>, vector<8x128xf32>
    tpu.vector_store %arg4[%c0_87, %c0_88], %285 {strides = array<i32>} : memref<8x128xf32, #tpu.memory_space<vmem>>, vector<8x128xf32>,
    return
  }
}

</mosaic_0001>

<llo_original>
// kernel: tpu_custom_call.1
$region0: #{tpu_custom_call.1}
  #allocation0 [shape = 'u32[]', space=smem, size = 0x4, offset = 0x4, fixed_abs, tag = 'smem constant byte address 0x4 - core index']
  #allocation1 [shape = 'u32[144,128]{1,0:T(1,128)}', space=vmem, size = 0x12000, scoped, tag = 'internal scratch']
  #allocation2 [shape = 'f32[64,512]{1,0:T(8,128)}', space=vmem, size = 0x20000, scoped, tag = 'scratch operand']
  %s0 = inlined_call_operand.hbm [shape: f32[64,128], index: 0, kind: input, shape index: {}]
  %s1 = inlined_call_operand.hbm [shape: f32[128,512], index: 1, kind: input, shape index: {}]
  %s2 = inlined_call_operand.hbm [shape: f32[128,512], index: 2, kind: input, shape index: {}]
  %s3 = inlined_call_operand.vmem [shape: f32[1,512], index: 3, kind: input, shape index: {}]
  %s4 = inlined_call_operand.hbm [shape: f32[8,128], index: 4, kind: output, shape index: {}]
  %s5 = sld [smem:[#allocation0]]
  $region38: #{tpu_custom_call.1} parent=0
    _
  %s7 = ssub.s32 1, %s5
  %s8 = scalar_select 0, %s7, %s5
  $region1: #{tpu_custom_call.1} parent=0
    #allocation3 [shape = 'u8[32768]{0}', space=vmem, size = 0x8000, scoped, tag = 'input window, operand 0, single buffered']
    #allocation4 [shape = 's32[1]{0}', space=sflag, size = 0x4, scoped, tag = 'scoped memory for tpu_custom_call.1']
    #allocation5 [shape = 's32[1]{0}', space=sflag, size = 0x4, scoped, tag = 'scoped memory for tpu_custom_call.1']
    #allocation6 [shape = 'u8[262144]{0}', space=vmem, size = 0x40000, scoped, tag = 'input window, operand 1, single buffered']
    #allocation7 [shape = 's32[1]{0}', space=sflag, size = 0x4, scoped, tag = 'scoped memory for tpu_custom_call.1']
    #allocation8 [shape = 'u8[262144]{0}', space=vmem, size = 0x40000, scoped, tag = 'input window, operand 2, single buffered']
    #allocation9 [shape = 'u8[4096]{0}', space=vmem, size = 0x1000, scoped, tag = 'output window, operand 0, single buffered']
    %9 = vsyncpa [#allocation4], 0
    %10 = vsyncpa [#allocation7], 0
    %11 = vsyncpa [#allocation5], 0
    // Predicated region
    $region2: #{tpu_custom_call.1} parent=1 // pred_check
      _
    $region3: #{tpu_custom_call.1} parent=1 // pred_check_branch
      %13 = sbr.rel (0) target = $region5
    $region4: #{tpu_custom_call.1} parent=1 // pred_region
      %s15 = ssub.s32 1024, 1024
      %16 = vsyncadd [#allocation4], %s15
      %s17 = sshll.u32 [#allocation3], 4
      %s18 = int_to_ptr.vmem [resolvable:$true] %s17
      %23 = dma.hbm_to_vmem [thread:$0]  %s0, 1024, %s18, [#allocation4], 128, 128, 8
    $region5: #{tpu_custom_call.1} parent=1 // pred_fallthru
      _
    // Predicated region
    $region6: #{tpu_custom_call.1} parent=1 // pred_check
      _
    $region7: #{tpu_custom_call.1} parent=1 // pred_check_branch
      %25 = sbr.rel (0) target = $region9
    $region8: #{tpu_custom_call.1} parent=1 // pred_region
      %s27 = ssub.s32 8192, 8192
      %28 = vsyncadd [#allocation7], %s27
      %s29 = sshll.u32 [#allocation6], 4
      %s30 = int_to_ptr.vmem [resolvable:$true] %s29
      %35 = dma.hbm_to_vmem [thread:$0]  %s1, 8192, %s30, [#allocation7], 512, 512, 32
    $region9: #{tpu_custom_call.1} parent=1 // pred_fallthru
      _
    // Predicated region
    $region10: #{tpu_custom_call.1} parent=1 // pred_check
      _
    $region11: #{tpu_custom_call.1} parent=1 // pred_check_branch
      %37 = sbr.rel (0) target = $region13
    $region12: #{tpu_custom_call.1} parent=1 // pred_region
      %s39 = ssub.s32 8192, 8192
      %40 = vsyncadd [#allocation7], %s39
      %s41 = sshll.u32 [#allocation8], 4
      %s42 = int_to_ptr.vmem [resolvable:$true] %s41
      %47 = dma.hbm_to_vmem [thread:$0]  %s2, 8192, %s42, [#allocation7], 512, 512, 32
    $region13: #{tpu_custom_call.1} parent=1 // pred_fallthru
      _
    // Predicated region
    $region14: #{tpu_custom_call.1} parent=1 // pred_check
      _
    $region15: #{tpu_custom_call.1} parent=1 // pred_check_branch
      %49 = sbr.rel (0) target = $region17
    $region16: #{tpu_custom_call.1} parent=1 // pred_region
      _
    $region17: #{tpu_custom_call.1} parent=1 // pred_fallthru
      _
    // Predicated region
    $region18: #{tpu_custom_call.1} parent=1 // pred_check
      _
    $region19: #{tpu_custom_call.1} parent=1 // pred_check_branch
      %51 = sbr.rel (0) target = $region21
    $region20: #{tpu_custom_call.1} parent=1 // pred_region
      %52 = dma.done [#allocation4], 1024
    $region21: #{tpu_custom_call.1} parent=1 // pred_fallthru
      _
    // Predicated region
    $region22: #{tpu_custom_call.1} parent=1 // pred_check
      _
    $region23: #{tpu_custom_call.1} parent=1 // pred_check_branch
      %54 = sbr.rel (0) target = $region25
    $region24: #{tpu_custom_call.1} parent=1 // pred_region
      %55 = dma.done [#allocation7], 8192
    $region25: #{tpu_custom_call.1} parent=1 // pred_fallthru
      _
    // Predicated region
    $region26: #{tpu_custom_call.1} parent=1 // pred_check
      _
    $region27: #{tpu_custom_call.1} parent=1 // pred_check_branch
      %57 = sbr.rel (0) target = $region29
    $region28: #{tpu_custom_call.1} parent=1 // pred_region
      %58 = dma.done [#allocation7], 8192
    $region29: #{tpu_custom_call.1} parent=1 // pred_fallthru
      _
    %v59 = vld [vmem:[#allocation3] sm:$0xff]
    %v60 = vld [vmem:[#allocation3 + $0x8] sm:$0xff]
    %v61 = vld [vmem:[#allocation3 + $0x10] sm:$0xff]
    %v62 = vld [vmem:[#allocation3 + $0x18] sm:$0xff]
    %v63 = vld [vmem:[#allocation3 + $0x20] sm:$0xff]
    %v64 = vld [vmem:[#allocation3 + $0x28] sm:$0xff]
    %v65 = vld [vmem:[#allocation3 + $0x30] sm:$0xff]
    %v66 = vld [vmem:[#allocation3 + $0x38] sm:$0xff]
    %v67 = vld [vmem:[#allocation6] sm:$0xff]
    %v68 = vld [vmem:[#allocation6 + $0x8] sm:$0xff]
    %v69 = vld [vmem:[#allocation6 + $0x10] sm:$0xff]
    %v70 = vld [vmem:[#allocation6 + $0x18] sm:$0xff]
    %v71 = vld [vmem:[#allocation6 + $0x20] sm:$0xff]
    %v72 = vld [vmem:[#allocation6 + $0x28] sm:$0xff]
    %v73 = vld [vmem:[#allocation6 + $0x30] sm:$0xff]
    %v74 = vld [vmem:[#allocation6 + $0x38] sm:$0xff]
    %v75 = vld [vmem:[#allocation6 + $0x40] sm:$0xff]
    %v76 = vld [vmem:[#allocation6 + $0x48] sm:$0xff]
    %v77 = vld [vmem:[#allocation6 + $0x50] sm:$0xff]
    %v78 = vld [vmem:[#allocation6 + $0x58] sm:$0xff]
    %v79 = vld [vmem:[#allocation6 + $0x60] sm:$0xff]
    %v80 = vld [vmem:[#allocation6 + $0x68] sm:$0xff]
    %v81 = vld [vmem:[#allocation6 + $0x70] sm:$0xff]
    %v82 = vld [vmem:[#allocation6 + $0x78] sm:$0xff]
    %v83 = vld [vmem:[#allocation6 + $0x80] sm:$0xff]
    %v84 = vld [vmem:[#allocation6 + $0x88] sm:$0xff]
    %v85 = vld [vmem:[#allocation6 + $0x90] sm:$0xff]
    %v86 = vld [vmem:[#allocation6 + $0x98] sm:$0xff]
    %v87 = vld [vmem:[#allocation6 + $0xa0] sm:$0xff]
    %v88 = vld [vmem:[#allocation6 + $0xa8] sm:$0xff]
    %v89 = vld [vmem:[#allocation6 + $0xb0] sm:$0xff]
    %v90 = vld [vmem:[#allocation6 + $0xb8] sm:$0xff]
    %v91 = vld [vmem:[#allocation6 + $0xc0] sm:$0xff]
    %v92 = vld [vmem:[#allocation6 + $0xc8] sm:$0xff]
    %v93 = vld [vmem:[#allocation6 + $0xd0] sm:$0xff]
    %v94 = vld [vmem:[#allocation6 + $0xd8] sm:$0xff]
    %v95 = vld [vmem:[#allocation6 + $0xe0] sm:$0xff]
    %v96 = vld [vmem:[#allocation6 + $0xe8] sm:$0xff]
    %v97 = vld [vmem:[#allocation6 + $0xf0] sm:$0xff]
    %v98 = vld [vmem:[#allocation6 + $0xf8] sm:$0xff]
    %v99 = vld [vmem:[#allocation6 + $0x100] sm:$0xff]
    %v100 = vld [vmem:[#allocation6 + $0x108] sm:$0xff]
    %v101 = vld [vmem:[#allocation6 + $0x110] sm:$0xff]
    %v102 = vld [vmem:[#allocation6 + $0x118] sm:$0xff]
    %v103 = vld [vmem:[#allocation6 + $0x120] sm:$0xff]
    %v104 = vld [vmem:[#allocation6 + $0x128] sm:$0xff]
    %v105 = vld [vmem:[#allocation6 + $0x130] sm:$0xff]
    %v106 = vld [vmem:[#allocation6 + $0x138] sm:$0xff]
    %v107 = vld [vmem:[#allocation6 + $0x140] sm:$0xff]
    %v108 = vld [vmem:[#allocation6 + $0x148] sm:$0xff]
    %v109 = vld [vmem:[#allocation6 + $0x150] sm:$0xff]
    %v110 = vld [vmem:[#allocation6 + $0x158] sm:$0xff]
    %v111 = vld [vmem:[#allocation6 + $0x160] sm:$0xff]
    %v112 = vld [vmem:[#allocation6 + $0x168] sm:$0xff]
    %v113 = vld [vmem:[#allocation6 + $0x170] sm:$0xff]
    %v114 = vld [vmem:[#allocation6 + $0x178] sm:$0xff]
    %v115 = vld [vmem:[#allocation6 + $0x180] sm:$0xff]
    %v116 = vld [vmem:[#allocation6 + $0x188] sm:$0xff]
    %v117 = vld [vmem:[#allocation6 + $0x190] sm:$0xff]
    %v118 = vld [vmem:[#allocation6 + $0x198] sm:$0xff]
    %v119 = vld [vmem:[#allocation6 + $0x1a0] sm:$0xff]
    %v120 = vld [vmem:[#allocation6 + $0x1a8] sm:$0xff]
    %v121 = vld [vmem:[#allocation6 + $0x1b0] sm:$0xff]
    %v122 = vld [vmem:[#allocation6 + $0x1b8] sm:$0xff]
    %v123 = vld [vmem:[#allocation6 + $0x1c0] sm:$0xff]
    %v124 = vld [vmem:[#allocation6 + $0x1c8] sm:$0xff]
    %v125 = vld [vmem:[#allocation6 + $0x1d0] sm:$0xff]
    %v126 = vld [vmem:[#allocation6 + $0x1d8] sm:$0xff]
    %v127 = vld [vmem:[#allocation6 + $0x1e0] sm:$0xff]
    %v128 = vld [vmem:[#allocation6 + $0x1e8] sm:$0xff]
    %v129 = vld [vmem:[#allocation6 + $0x1f0] sm:$0xff]
    %v130 = vld [vmem:[#allocation6 + $0x1f8] sm:$0xff]
    %131 = vmatprep.subr.mxu0 %v128
    %132 = vmatpush1.msra.mxu0 %v127
    %133 = vmatprep.subr.mxu0 %v124
    %134 = vmatpush1.msra.mxu0 %v123
    %135 = vmatprep.subr.mxu0 %v120
    %136 = vmatpush1.msra.mxu0 %v119
    %137 = vmatprep.subr.mxu0 %v116
    %138 = vmatpush1.msra.mxu0 %v115
    %139 = vmatprep.subr.mxu0 %v112
    %140 = vmatpush1.msra.mxu0 %v111
    %141 = vmatprep.subr.mxu0 %v108
    %142 = vmatpush1.msra.mxu0 %v107
    %143 = vmatprep.subr.mxu0 %v104
    %144 = vmatpush1.msra.mxu0 %v103
    %145 = vmatprep.subr.mxu0 %v100
    %146 = vmatpush1.msra.mxu0 %v99
    %147 = vmatprep.subr.mxu0 %v96
    %148 = vmatpush1.msra.mxu0 %v95
    %149 = vmatprep.subr.mxu0 %v92
    %150 = vmatpush1.msra.mxu0 %v91
    %151 = vmatprep.subr.mxu0 %v88
    %152 = vmatpush1.msra.mxu0 %v87
    %153 = vmatprep.subr.mxu0 %v84
    %154 = vmatpush1.msra.mxu0 %v83
    %155 = vmatprep.subr.mxu0 %v80
    %156 = vmatpush1.msra.mxu0 %v79
    %157 = vmatprep.subr.mxu0 %v76
    %158 = vmatpush1.msra.mxu0 %v75
    %159 = vmatprep.subr.mxu0 %v72
    %160 = vmatpush1.msra.mxu0 %v71
    %161 = vmatprep.subr.mxu0 %v68
    %162 = vmatpush1.msra.mxu0 %v67
    %163 = vmatprep.subr.mxu0 0.0
    %164 = vmatpush2.msra.mxu0 0.0
    %165 = vmatprep.subr.mxu0 0.0
    %166 = vmatpush2.msra.mxu0 0.0
    %167 = vmatprep.subr.mxu0 0.0
    %168 = vmatpush2.msra.mxu0 0.0
    %169 = vmatprep.subr.mxu0 0.0
    %170 = vmatpush2.msra.mxu0 0.0
    %171 = vmatprep.subr.mxu0 0.0
    %172 = vmatpush2.msra.mxu0 0.0
    %173 = vmatprep.subr.mxu0 0.0
    %174 = vmatpush2.msra.mxu0 0.0
    %175 = vmatprep.subr.mxu0 0.0
    %176 = vmatpush2.msra.mxu0 0.0
    %177 = vmatprep.subr.mxu0 0.0
    %178 = vmatpush2.msra.mxu0 0.0
    %179 = vmatprep.subr.mxu0 0.0
    %180 = vmatpush2.msra.mxu0 0.0
    %181 = vmatprep.subr.mxu0 0.0
    %182 = vmatpush2.msra.mxu0 0.0
    %183 = vmatprep.subr.mxu0 0.0
    %184 = vmatpush2.msra.mxu0 0.0
    %185 = vmatprep.subr.mxu0 0.0
    %186 = vmatpush2.msra.mxu0 0.0
    %187 = vmatprep.subr.mxu0 0.0
    %188 = vmatpush2.msra.mxu0 0.0
    %189 = vmatprep.subr.mxu0 0.0
    %190 = vmatpush2.msra.mxu0 0.0
    %191 = vmatprep.subr.mxu0 0.0
    %192 = vmatpush2.msra.mxu0 0.0
    %193 = vmatprep.subr.mxu0 0.0
    %194 = vmatpush2.msra.mxu0 0.0
    %195 = vmatprep.mubr.f32.mxu0 0.0
    %196 = vmatmul.mubr.f32.gmra.mxu0 %v59
    %v197 = vpop.f32.mrf.mxu0
    %v198 = vadd.f32 0.0, %v197
    %v199 = vpop.f32.mrf.mxu0
    %v200 = vadd.f32 0.0, %v199
    %201 = vmatprep.mubr.f32.mxu0 0.0
    %202 = vmatmul.mubr.f32.gmra.mxu0 %v60
    %v203 = vpop.f32.mrf.mxu0
    %v204 = vadd.f32 0.0, %v203
    %v205 = vpop.f32.mrf.mxu0
    %v206 = vadd.f32 0.0, %v205
    %207 = vmatprep.mubr.f32.mxu0 0.0
    %208 = vmatmul.mubr.f32.gmra.mxu0 %v61
    %v209 = vpop.f32.mrf.mxu0
    %v210 = vadd.f32 0.0, %v209
    %v211 = vpop.f32.mrf.mxu0
    %v212 = vadd.f32 0.0, %v211
    %213 = vmatprep.mubr.f32.mxu0 0.0
    %214 = vmatmul.mubr.f32.gmra.mxu0 %v62
    %v215 = vpop.f32.mrf.mxu0
    %v216 = vadd.f32 0.0, %v215
    %v217 = vpop.f32.mrf.mxu0
    %v218 = vadd.f32 0.0, %v217
    %219 = vmatprep.mubr.f32.mxu0 0.0
    %220 = vmatmul.mubr.f32.gmra.mxu0 %v63
    %v221 = vpop.f32.mrf.mxu0
    %v222 = vadd.f32 0.0, %v221
    %v223 = vpop.f32.mrf.mxu0
    %v224 = vadd.f32 0.0, %v223
    %225 = vmatprep.mubr.f32.mxu0 0.0
    %226 = vmatmul.mubr.f32.gmra.mxu0 %v64
    %v227 = vpop.f32.mrf.mxu0
    %v228 = vadd.f32 0.0, %v227
    %v229 = vpop.f32.mrf.mxu0
    %v230 = vadd.f32 0.0, %v229
    %231 = vmatprep.mubr.f32.mxu0 0.0
    %232 = vmatmul.mubr.f32.gmra.mxu0 %v65
    %v233 = vpop.f32.mrf.mxu0
    %v234 = vadd.f32 0.0, %v233
    %v235 = vpop.f32.mrf.mxu0
    %v236 = vadd.f32 0.0, %v235
    %237 = vmatprep.mubr.f32.mxu0 0.0
    %238 = vmatmul.mubr.f32.gmra.mxu0 %v66
    %v239 = vpop.f32.mrf.mxu0
    %v240 = vadd.f32 0.0, %v239
    %v241 = vpop.f32.mrf.mxu0
    %v242 = vadd.f32 0.0, %v241
    %243 = vdwg.mxu0
    %244 = vmatprep.subr.mxu0 %v130
    %245 = vmatpush1.msra.mxu0 %v129
    %246 = vmatprep.subr.mxu0 %v126
    %247 = vmatpush1.msra.mxu0 %v125
    %248 = vmatprep.subr.mxu0 %v122
    %249 = vmatpush1.msra.mxu0 %v121
    %250 = vmatprep.subr.mxu0 %v118
    %251 = vmatpush1.msra.mxu0 %v117
    %252 = vmatprep.subr.mxu0 %v114
    %253 = vmatpush1.msra.mxu0 %v113
    %254 = vmatprep.subr.mxu0 %v110
    %255 = vmatpush1.msra.mxu0 %v109
    %256 = vmatprep.subr.mxu0 %v106
    %257 = vmatpush1.msra.mxu0 %v105
    %258 = vmatprep.subr.mxu0 %v102
    %259 = vmatpush1.msra.mxu0 %v101
    %260 = vmatprep.subr.mxu0 %v98
    %261 = vmatpush1.msra.mxu0 %v97
    %262 = vmatprep.subr.mxu0 %v94
    %263 = vmatpush1.msra.mxu0 %v93
    %264 = vmatprep.subr.mxu0 %v90
    %265 = vmatpush1.msra.mxu0 %v89
    %266 = vmatprep.subr.mxu0 %v86
    %267 = vmatpush1.msra.mxu0 %v85
    %268 = vmatprep.subr.mxu0 %v82
    %269 = vmatpush1.msra.mxu0 %v81
    %270 = vmatprep.subr.mxu0 %v78
    %271 = vmatpush1.msra.mxu0 %v77
    %272 = vmatprep.subr.mxu0 %v74
    %273 = vmatpush1.msra.mxu0 %v73
    %274 = vmatprep.subr.mxu0 %v70
    %275 = vmatpush1.msra.mxu0 %v69
    %276 = vmatprep.subr.mxu0 0.0
    %277 = vmatpush2.msra.mxu0 0.0
    %278 = vmatprep.subr.mxu0 0.0
    %279 = vmatpush2.msra.mxu0 0.0
    %280 = vmatprep.subr.mxu0 0.0
    %281 = vmatpush2.msra.mxu0 0.0
    %282 = vmatprep.subr.mxu0 0.0
    %283 = vmatpush2.msra.mxu0 0.0
    %284 = vmatprep.subr.mxu0 0.0
    %285 = vmatpush2.msra.mxu0 0.0
    %286 = vmatprep.subr.mxu0 0.0
    %287 = vmatpush2.msra.mxu0 0.0
    %288 = vmatprep.subr.mxu0 0.0
    %289 = vmatpush2.msra.mxu0 0.0
    %290 = vmatprep.subr.mxu0 0.0
    %291 = vmatpush2.msra.mxu0 0.0
    %292 = vmatprep.subr.mxu0 0.0
    %293 = vmatpush2.msra.mxu0 0.0
    %294 = vmatprep.subr.mxu0 0.0
    %295 = vmatpush2.msra.mxu0 0.0
    %296 = vmatprep.subr.mxu0 0.0
    %297 = vmatpush2.msra.mxu0 0.0
    %298 = vmatprep.subr.mxu0 0.0
    %299 = vmatpush2.msra.mxu0 0.0
    %300 = vmatprep.subr.mxu0 0.0
    %301 = vmatpush2.msra.mxu0 0.0
    %302 = vmatprep.subr.mxu0 0.0
    %303 = vmatpush2.msra.mxu0 0.0
    %304 = vmatprep.subr.mxu0 0.0
    %305 = vmatpush2.msra.mxu0 0.0
    %306 = vmatprep.subr.mxu0 0.0
    %307 = vmatpush2.msra.mxu0 0.0
    %308 = vmatprep.mubr.f32.mxu0 0.0
    %309 = vmatmul.mubr.f32.gmra.mxu0 %v59
    %v310 = vpop.f32.mrf.mxu0
    %v311 = vadd.f32 0.0, %v310
    %v312 = vpop.f32.mrf.mxu0
    %v313 = vadd.f32 0.0, %v312
    %314 = vmatprep.mubr.f32.mxu0 0.0
    %315 = vmatmul.mubr.f32.gmra.mxu0 %v60
    %v316 = vpop.f32.mrf.mxu0
    %v317 = vadd.f32 0.0, %v316
    %v318 = vpop.f32.mrf.mxu0
    %v319 = vadd.f32 0.0, %v318
    %320 = vmatprep.mubr.f32.mxu0 0.0
    %321 = vmatmul.mubr.f32.gmra.mxu0 %v61
    %v322 = vpop.f32.mrf.mxu0
    %v323 = vadd.f32 0.0, %v322
    %v324 = vpop.f32.mrf.mxu0
    %v325 = vadd.f32 0.0, %v324
    %326 = vmatprep.mubr.f32.mxu0 0.0
    %327 = vmatmul.mubr.f32.gmra.mxu0 %v62
    %v328 = vpop.f32.mrf.mxu0
    %v329 = vadd.f32 0.0, %v328
    %v330 = vpop.f32.mrf.mxu0
    %v331 = vadd.f32 0.0, %v330
    %332 = vmatprep.mubr.f32.mxu0 0.0
    %333 = vmatmul.mubr.f32.gmra.mxu0 %v63
    %v334 = vpop.f32.mrf.mxu0
    %v335 = vadd.f32 0.0, %v334
    %v336 = vpop.f32.mrf.mxu0
    %v337 = vadd.f32 0.0, %v336
    %338 = vmatprep.mubr.f32.mxu0 0.0
    %339 = vmatmul.mubr.f32.gmra.mxu0 %v64
    %v340 = vpop.f32.mrf.mxu0
    %v341 = vadd.f32 0.0, %v340
    %v342 = vpop.f32.mrf.mxu0
    %v343 = vadd.f32 0.0, %v342
    %344 = vmatprep.mubr.f32.mxu0 0.0
    %345 = vmatmul.mubr.f32.gmra.mxu0 %v65
    %v346 = vpop.f32.mrf.mxu0
    %v347 = vadd.f32 0.0, %v346
    %v348 = vpop.f32.mrf.mxu0
    %v349 = vadd.f32 0.0, %v348
    %350 = vmatprep.mubr.f32.mxu0 0.0
    %351 = vmatmul.mubr.f32.gmra.mxu0 %v66
    %v352 = vpop.f32.mrf.mxu0
    %v353 = vadd.f32 0.0, %v352
    %v354 = vpop.f32.mrf.mxu0
    %v355 = vadd.f32 0.0, %v354
    %356 = vdwg.mxu0
    %357 = vst [vmem:[#allocation2] sm:$0xff] %v198
    %358 = vst [vmem:[#allocation2 + $0x8] sm:$0xff] %v200
    %359 = vst [vmem:[#allocation2 + $0x10] sm:$0xff] %v311
    %360 = vst [vmem:[#allocation2 + $0x18] sm:$0xff] %v313
    %361 = vst [vmem:[#allocation2 + $0x20] sm:$0xff] %v204
    %362 = vst [vmem:[#allocation2 + $0x28] sm:$0xff] %v206
    %363 = vst [vmem:[#allocation2 + $0x30] sm:$0xff] %v317
    %364 = vst [vmem:[#allocation2 + $0x38] sm:$0xff] %v319
    %365 = vst [vmem:[#allocation2 + $0x40] sm:$0xff] %v210
    %366 = vst [vmem:[#allocation2 + $0x48] sm:$0xff] %v212
    %367 = vst [vmem:[#allocation2 + $0x50] sm:$0xff] %v323
    %368 = vst [vmem:[#allocation2 + $0x58] sm:$0xff] %v325
    %369 = vst [vmem:[#allocation2 + $0x60] sm:$0xff] %v216
    %370 = vst [vmem:[#allocation2 + $0x68] sm:$0xff] %v218
    %371 = vst [vmem:[#allocation2 + $0x70] sm:$0xff] %v329
    %372 = vst [vmem:[#allocation2 + $0x78] sm:$0xff] %v331
    %373 = vst [vmem:[#allocation2 + $0x80] sm:$0xff] %v222
    %374 = vst [vmem:[#allocation2 + $0x88] sm:$0xff] %v224
    %375 = vst [vmem:[#allocation2 + $0x90] sm:$0xff] %v335
    %376 = vst [vmem:[#allocation2 + $0x98] sm:$0xff] %v337
    %377 = vst [vmem:[#allocation2 + $0xa0] sm:$0xff] %v228
    %378 = vst [vmem:[#allocation2 + $0xa8] sm:$0xff] %v230
    %379 = vst [vmem:[#allocation2 + $0xb0] sm:$0xff] %v341
    %380 = vst [vmem:[#allocation2 + $0xb8] sm:$0xff] %v343
    %381 = vst [vmem:[#allocation2 + $0xc0] sm:$0xff] %v234
    %382 = vst [vmem:[#allocation2 + $0xc8] sm:$0xff] %v236
    %383 = vst [vmem:[#allocation2 + $0xd0] sm:$0xff] %v347
    %384 = vst [vmem:[#allocation2 + $0xd8] sm:$0xff] %v349
    %385 = vst [vmem:[#allocation2 + $0xe0] sm:$0xff] %v240
    %386 = vst [vmem:[#allocation2 + $0xe8] sm:$0xff] %v242
    %387 = vst [vmem:[#allocation2 + $0xf0] sm:$0xff] %v353
    %388 = vst [vmem:[#allocation2 + $0xf8] sm:$0xff] %v355
    %s389 = smul.u32 0, 4
    %s390 = smul.addr %s389, 8
    %s391 = scalar_lea.vmem [#allocation2], %s390
    %v392 = vld [vmem:[%s391] sm:$0xff]
    %v393 = vld [vmem:[%s391 + $0x8] sm:$0xff]
    %v394 = vld [vmem:[%s391 + $0x10] sm:$0xff]
    %v395 = vld [vmem:[%s391 + $0x18] sm:$0xff]
    %v396 = vld [vmem:[#allocation8] sm:$0xff]
    %v397 = vld [vmem:[#allocation8 + $0x8] sm:$0xff]
    %v398 = vld [vmem:[#allocation8 + $0x10] sm:$0xff]
    %v399 = vld [vmem:[#allocation8 + $0x18] sm:$0xff]
    %v400 = vld [vmem:[#allocation8 + $0x20] sm:$0xff]
    %v401 = vld [vmem:[#allocation8 + $0x28] sm:$0xff]
    %v402 = vld [vmem:[#allocation8 + $0x30] sm:$0xff]
    %v403 = vld [vmem:[#allocation8 + $0x38] sm:$0xff]
    %v404 = vld [vmem:[#allocation8 + $0x40] sm:$0xff]
    %v405 = vld [vmem:[#allocation8 + $0x48] sm:$0xff]
    %v406 = vld [vmem:[#allocation8 + $0x50] sm:$0xff]
    %v407 = vld [vmem:[#allocation8 + $0x58] sm:$0xff]
    %v408 = vld [vmem:[#allocation8 + $0x60] sm:$0xff]
    %v409 = vld [vmem:[#allocation8 + $0x68] sm:$0xff]
    %v410 = vld [vmem:[#allocation8 + $0x70] sm:$0xff]
    %v411 = vld [vmem:[#allocation8 + $0x78] sm:$0xff]
    %v412 = vld [vmem:[#allocation8 + $0x80] sm:$0xff]
    %v413 = vld [vmem:[#allocation8 + $0x88] sm:$0xff]
    %v414 = vld [vmem:[#allocation8 + $0x90] sm:$0xff]
    %v415 = vld [vmem:[#allocation8 + $0x98] sm:$0xff]
    %v416 = vld [vmem:[#allocation8 + $0xa0] sm:$0xff]
    %v417 = vld [vmem:[#allocation8 + $0xa8] sm:$0xff]
    %v418 = vld [vmem:[#allocation8 + $0xb0] sm:$0xff]
    %v419 = vld [vmem:[#allocation8 + $0xb8] sm:$0xff]
    %v420 = vld [vmem:[#allocation8 + $0xc0] sm:$0xff]
    %v421 = vld [vmem:[#allocation8 + $0xc8] sm:$0xff]
    %v422 = vld [vmem:[#allocation8 + $0xd0] sm:$0xff]
    %v423 = vld [vmem:[#allocation8 + $0xd8] sm:$0xff]
    %v424 = vld [vmem:[#allocation8 + $0xe0] sm:$0xff]
    %v425 = vld [vmem:[#allocation8 + $0xe8] sm:$0xff]
    %v426 = vld [vmem:[#allocation8 + $0xf0] sm:$0xff]
    %v427 = vld [vmem:[#allocation8 + $0xf8] sm:$0xff]
    %v428 = vld [vmem:[#allocation8 + $0x100] sm:$0xff]
    %v429 = vld [vmem:[#allocation8 + $0x108] sm:$0xff]
    %v430 = vld [vmem:[#allocation8 + $0x110] sm:$0xff]
    %v431 = vld [vmem:[#allocation8 + $0x118] sm:$0xff]
    %v432 = vld [vmem:[#allocation8 + $0x120] sm:$0xff]
    %v433 = vld [vmem:[#allocation8 + $0x128] sm:$0xff]
    %v434 = vld [vmem:[#allocation8 + $0x130] sm:$0xff]
    %v435 = vld [vmem:[#allocation8 + $0x138] sm:$0xff]
    %v436 = vld [vmem:[#allocation8 + $0x140] sm:$0xff]
    %v437 = vld [vmem:[#allocation8 + $0x148] sm:$0xff]
    %v438 = vld [vmem:[#allocation8 + $0x150] sm:$0xff]
    %v439 = vld [vmem:[#allocation8 + $0x158] sm:$0xff]
    %v440 = vld [vmem:[#allocation8 + $0x160] sm:$0xff]
    %v441 = vld [vmem:[#allocation8 + $0x168] sm:$0xff]
    %v442 = vld [vmem:[#allocation8 + $0x170] sm:$0xff]
    %v443 = vld [vmem:[#allocation8 + $0x178] sm:$0xff]
    %v444 = vld [vmem:[#allocation8 + $0x180] sm:$0xff]
    %v445 = vld [vmem:[#allocation8 + $0x188] sm:$0xff]
    %v446 = vld [vmem:[#allocation8 + $0x190] sm:$0xff]
    %v447 = vld [vmem:[#allocation8 + $0x198] sm:$0xff]
    %v448 = vld [vmem:[#allocation8 + $0x1a0] sm:$0xff]
    %v449 = vld [vmem:[#allocation8 + $0x1a8] sm:$0xff]
    %v450 = vld [vmem:[#allocation8 + $0x1b0] sm:$0xff]
    %v451 = vld [vmem:[#allocation8 + $0x1b8] sm:$0xff]
    %v452 = vld [vmem:[#allocation8 + $0x1c0] sm:$0xff]
    %v453 = vld [vmem:[#allocation8 + $0x1c8] sm:$0xff]
    %v454 = vld [vmem:[#allocation8 + $0x1d0] sm:$0xff]
    %v455 = vld [vmem:[#allocation8 + $0x1d8] sm:$0xff]
    %v456 = vld [vmem:[#allocation8 + $0x1e0] sm:$0xff]
    %v457 = vld [vmem:[#allocation8 + $0x1e8] sm:$0xff]
    %v458 = vld [vmem:[#allocation8 + $0x1f0] sm:$0xff]
    %v459 = vld [vmem:[#allocation8 + $0x1f8] sm:$0xff]
    %460 = vmatprep.subr.mxu0 %v457
    %461 = vmatpush1.msra.mxu0 %v456
    %462 = vmatprep.subr.mxu0 %v453
    %463 = vmatpush1.msra.mxu0 %v452
    %464 = vmatprep.subr.mxu0 %v449
    %465 = vmatpush1.msra.mxu0 %v448
    %466 = vmatprep.subr.mxu0 %v445
    %467 = vmatpush1.msra.mxu0 %v444
    %468 = vmatprep.subr.mxu0 %v441
    %469 = vmatpush1.msra.mxu0 %v440
    %470 = vmatprep.subr.mxu0 %v437
    %471 = vmatpush1.msra.mxu0 %v436
    %472 = vmatprep.subr.mxu0 %v433
    %473 = vmatpush1.msra.mxu0 %v432
    %474 = vmatprep.subr.mxu0 %v429
    %475 = vmatpush1.msra.mxu0 %v428
    %476 = vmatprep.subr.mxu0 %v425
    %477 = vmatpush1.msra.mxu0 %v424
    %478 = vmatprep.subr.mxu0 %v421
    %479 = vmatpush1.msra.mxu0 %v420
    %480 = vmatprep.subr.mxu0 %v417
    %481 = vmatpush1.msra.mxu0 %v416
    %482 = vmatprep.subr.mxu0 %v413
    %483 = vmatpush1.msra.mxu0 %v412
    %484 = vmatprep.subr.mxu0 %v409
    %485 = vmatpush1.msra.mxu0 %v408
    %486 = vmatprep.subr.mxu0 %v405
    %487 = vmatpush1.msra.mxu0 %v404
    %488 = vmatprep.subr.mxu0 %v401
    %489 = vmatpush1.msra.mxu0 %v400
    %490 = vmatprep.subr.mxu0 %v397
    %491 = vmatpush1.msra.mxu0 %v396
    %492 = vmatprep.subr.mxu0 0.0
    %493 = vmatpush2.msra.mxu0 0.0
    %494 = vmatprep.subr.mxu0 0.0
    %495 = vmatpush2.msra.mxu0 0.0
    %496 = vmatprep.subr.mxu0 0.0
    %497 = vmatpush2.msra.mxu0 0.0
    %498 = vmatprep.subr.mxu0 0.0
    %499 = vmatpush2.msra.mxu0 0.0
    %500 = vmatprep.subr.mxu0 0.0
    %501 = vmatpush2.msra.mxu0 0.0
    %502 = vmatprep.subr.mxu0 0.0
    %503 = vmatpush2.msra.mxu0 0.0
    %504 = vmatprep.subr.mxu0 0.0
    %505 = vmatpush2.msra.mxu0 0.0
    %506 = vmatprep.subr.mxu0 0.0
    %507 = vmatpush2.msra.mxu0 0.0
    %508 = vmatprep.subr.mxu0 0.0
    %509 = vmatpush2.msra.mxu0 0.0
    %510 = vmatprep.subr.mxu0 0.0
    %511 = vmatpush2.msra.mxu0 0.0
    %512 = vmatprep.subr.mxu0 0.0
    %513 = vmatpush2.msra.mxu0 0.0
    %514 = vmatprep.subr.mxu0 0.0
    %515 = vmatpush2.msra.mxu0 0.0
    %516 = vmatprep.subr.mxu0 0.0
    %517 = vmatpush2.msra.mxu0 0.0
    %518 = vmatprep.subr.mxu0 0.0
    %519 = vmatpush2.msra.mxu0 0.0
    %520 = vmatprep.subr.mxu0 0.0
    %521 = vmatpush2.msra.mxu0 0.0
    %522 = vmatprep.subr.mxu0 0.0
    %523 = vmatpush2.msra.mxu0 0.0
    %524 = vmatprep.mubr.f32.mxu0 0.0
    %525 = vmatmul.mubr.f32.gmra.mxu0 0.0
    %v526 = vpop.f32.mrf.mxu0
    %v527 = vadd.f32 0.0, %v526
    %v528 = vpop.f32.mrf.mxu0
    %v529 = vadd.f32 0.0, %v528
    %530 = vdwg.mxu0
    %531 = vmatprep.subr.mxu0 %v459
    %532 = vmatpush1.msra.mxu0 %v458
    %533 = vmatprep.subr.mxu0 %v455
    %534 = vmatpush1.msra.mxu0 %v454
    %535 = vmatprep.subr.mxu0 %v451
    %536 = vmatpush1.msra.mxu0 %v450
    %537 = vmatprep.subr.mxu0 %v447
    %538 = vmatpush1.msra.mxu0 %v446
    %539 = vmatprep.subr.mxu0 %v443
    %540 = vmatpush1.msra.mxu0 %v442
    %541 = vmatprep.subr.mxu0 %v439
    %542 = vmatpush1.msra.mxu0 %v438
    %543 = vmatprep.subr.mxu0 %v435
    %544 = vmatpush1.msra.mxu0 %v434
    %545 = vmatprep.subr.mxu0 %v431
    %546 = vmatpush1.msra.mxu0 %v430
    %547 = vmatprep.subr.mxu0 %v427
    %548 = vmatpush1.msra.mxu0 %v426
    %549 = vmatprep.subr.mxu0 %v423
    %550 = vmatpush1.msra.mxu0 %v422
    %551 = vmatprep.subr.mxu0 %v419
    %552 = vmatpush1.msra.mxu0 %v418
    %553 = vmatprep.subr.mxu0 %v415
    %554 = vmatpush1.msra.mxu0 %v414
    %555 = vmatprep.subr.mxu0 %v411
    %556 = vmatpush1.msra.mxu0 %v410
    %557 = vmatprep.subr.mxu0 %v407
    %558 = vmatpush1.msra.mxu0 %v406
    %559 = vmatprep.subr.mxu0 %v403
    %560 = vmatpush1.msra.mxu0 %v402
    %561 = vmatprep.subr.mxu0 %v399
    %562 = vmatpush1.msra.mxu0 %v398
    %563 = vmatprep.subr.mxu0 0.0
    %564 = vmatpush2.msra.mxu0 0.0
    %565 = vmatprep.subr.mxu0 0.0
    %566 = vmatpush2.msra.mxu0 0.0
    %567 = vmatprep.subr.mxu0 0.0
    %568 = vmatpush2.msra.mxu0 0.0
    %569 = vmatprep.subr.mxu0 0.0
    %570 = vmatpush2.msra.mxu0 0.0
    %571 = vmatprep.subr.mxu0 0.0
    %572 = vmatpush2.msra.mxu0 0.0
    %573 = vmatprep.subr.mxu0 0.0
    %574 = vmatpush2.msra.mxu0 0.0
    %575 = vmatprep.subr.mxu0 0.0
    %576 = vmatpush2.msra.mxu0 0.0
    %577 = vmatprep.subr.mxu0 0.0
    %578 = vmatpush2.msra.mxu0 0.0
    %579 = vmatprep.subr.mxu0 0.0
    %580 = vmatpush2.msra.mxu0 0.0
    %581 = vmatprep.subr.mxu0 0.0
    %582 = vmatpush2.msra.mxu0 0.0
    %583 = vmatprep.subr.mxu0 0.0
    %584 = vmatpush2.msra.mxu0 0.0
    %585 = vmatprep.subr.mxu0 0.0
    %586 = vmatpush2.msra.mxu0 0.0
    %587 = vmatprep.subr.mxu0 0.0
    %588 = vmatpush2.msra.mxu0 0.0
    %589 = vmatprep.subr.mxu0 0.0
    %590 = vmatpush2.msra.mxu0 0.0
    %591 = vmatprep.subr.mxu0 0.0
    %592 = vmatpush2.msra.mxu0 0.0
    %593 = vmatprep.subr.mxu0 0.0
    %594 = vmatpush2.msra.mxu0 0.0
    %595 = vmatprep.mubr.f32.mxu0 0.0
    %596 = vmatmul.mubr.f32.gmra.mxu0 0.0
    %v597 = vpop.f32.mrf.mxu0
    %v598 = vadd.f32 0.0, %v597
    %v599 = vpop.f32.mrf.mxu0
    %v600 = vadd.f32 0.0, %v599
    %601 = vdwg.mxu0
    %v602 = vadd.f32 %v392, %v527
    %v603 = vadd.f32 %v393, %v529
    %v604 = vadd.f32 %v394, %v598
    %v605 = vadd.f32 %v395, %v600
    %v606 = vld [vmem:[%s3] sm:$0xf]
    %v608 = vlaneseq
    %v609 = vshrl.u32 %v608, 7
    %v610 = vsub.s32 0, %v609
    %v611 = vrot.slane %v606, %v610
    %v612 = vlaneseq
    %v613 = vshrl.u32 %v612, 7
    %v614 = vsub.s32 1, %v613
    %v615 = vrot.slane %v606, %v614
    %v616 = vlaneseq
    %v617 = vshrl.u32 %v616, 7
    %v618 = vsub.s32 2, %v617
    %v619 = vrot.slane %v606, %v618
    %v620 = vlaneseq
    %v621 = vshrl.u32 %v620, 7
    %v622 = vsub.s32 3, %v621
    %v623 = vrot.slane %v606, %v622
    %v628 = vadd.f32 %v602, %v611
    %v629 = vadd.f32 %v603, %v615
    %v630 = vadd.f32 %v604, %v619
    %v631 = vadd.f32 %v605, %v623
    %v632 = vxor.u32 %v628, 2147483648
    %v633 = vmul.f32 %v632, 1.442695
    %v634 = vpow.pop %v633
    %v635 = vadd.f32 %v634, 1.0
    %v636 = vrcp.pop %v635
    %v637 = vmul.f32 1.0, %v636
    %v638 = vxor.u32 %v629, 2147483648
    %v639 = vmul.f32 %v638, 1.442695
    %v640 = vpow.pop %v639
    %v641 = vadd.f32 %v640, 1.0
    %v642 = vrcp.pop %v641
    %v643 = vmul.f32 1.0, %v642
    %v644 = vtanh.pop %v630
    %v645 = vxor.u32 %v631, 2147483648
    %v646 = vmul.f32 %v645, 1.442695
    %v647 = vpow.pop %v646
    %v648 = vadd.f32 %v647, 1.0
    %v649 = vrcp.pop %v648
    %v650 = vmul.f32 1.0, %v649
    %v651 = vmul.f32 %v643, 0.0
    %v652 = vmul.f32 %v637, %v644
    %v653 = vadd.f32 %v651, %v652
    %v654 = vtanh.pop %v653
    %v655 = vmul.f32 %v650, %v654
    %s656 = smul.u32 1, 4
    %s657 = smul.addr %s656, 8
    %s658 = scalar_lea.vmem [#allocation2], %s657
    %v659 = vld [vmem:[%s658] sm:$0xff]
    %v660 = vld [vmem:[%s658 + $0x8] sm:$0xff]
    %v661 = vld [vmem:[%s658 + $0x10] sm:$0xff]
    %v662 = vld [vmem:[%s658 + $0x18] sm:$0xff]
    %663 = vmatprep.subr.mxu0 %v457
    %664 = vmatpush1.msra.mxu0 %v456
    %665 = vmatprep.subr.mxu0 %v453
    %666 = vmatpush1.msra.mxu0 %v452
    %667 = vmatprep.subr.mxu0 %v449
    %668 = vmatpush1.msra.mxu0 %v448
    %669 = vmatprep.subr.mxu0 %v445
    %670 = vmatpush1.msra.mxu0 %v444
    %671 = vmatprep.subr.mxu0 %v441
    %672 = vmatpush1.msra.mxu0 %v440
    %673 = vmatprep.subr.mxu0 %v437
    %674 = vmatpush1.msra.mxu0 %v436
    %675 = vmatprep.subr.mxu0 %v433
    %676 = vmatpush1.msra.mxu0 %v432
    %677 = vmatprep.subr.mxu0 %v429
    %678 = vmatpush1.msra.mxu0 %v428
    %679 = vmatprep.subr.mxu0 %v425
    %680 = vmatpush1.msra.mxu0 %v424
    %681 = vmatprep.subr.mxu0 %v421
    %682 = vmatpush1.msra.mxu0 %v420
    %683 = vmatprep.subr.mxu0 %v417
    %684 = vmatpush1.msra.mxu0 %v416
    %685 = vmatprep.subr.mxu0 %v413
    %686 = vmatpush1.msra.mxu0 %v412
    %687 = vmatprep.subr.mxu0 %v409
    %688 = vmatpush1.msra.mxu0 %v408
    %689 = vmatprep.subr.mxu0 %v405
    %690 = vmatpush1.msra.mxu0 %v404
    %691 = vmatprep.subr.mxu0 %v401
    %692 = vmatpush1.msra.mxu0 %v400
    %693 = vmatprep.subr.mxu0 %v397
    %694 = vmatpush1.msra.mxu0 %v396
    %695 = vmatprep.subr.mxu0 0.0
    %696 = vmatpush2.msra.mxu0 0.0
    %697 = vmatprep.subr.mxu0 0.0
    %698 = vmatpush2.msra.mxu0 0.0
    %699 = vmatprep.subr.mxu0 0.0
    %700 = vmatpush2.msra.mxu0 0.0
    %701 = vmatprep.subr.mxu0 0.0
    %702 = vmatpush2.msra.mxu0 0.0
    %703 = vmatprep.subr.mxu0 0.0
    %704 = vmatpush2.msra.mxu0 0.0
    %705 = vmatprep.subr.mxu0 0.0
    %706 = vmatpush2.msra.mxu0 0.0
    %707 = vmatprep.subr.mxu0 0.0
    %708 = vmatpush2.msra.mxu0 0.0
    %709 = vmatprep.subr.mxu0 0.0
    %710 = vmatpush2.msra.mxu0 0.0
    %711 = vmatprep.subr.mxu0 0.0
    %712 = vmatpush2.msra.mxu0 0.0
    %713 = vmatprep.subr.mxu0 0.0
    %714 = vmatpush2.msra.mxu0 0.0
    %715 = vmatprep.subr.mxu0 0.0
    %716 = vmatpush2.msra.mxu0 0.0
    %717 = vmatprep.subr.mxu0 0.0
    %718 = vmatpush2.msra.mxu0 0.0
    %719 = vmatprep.subr.mxu0 0.0
    %720 = vmatpush2.msra.mxu0 0.0
    %721 = vmatprep.subr.mxu0 0.0
    %722 = vmatpush2.msra.mxu0 0.0
    %723 = vmatprep.subr.mxu0 0.0
    %724 = vmatpush2.msra.mxu0 0.0
    %725 = vmatprep.subr.mxu0 0.0
    %726 = vmatpush2.msra.mxu0 0.0
    %727 = vmatprep.mubr.f32.mxu0 0.0
    %728 = vmatmul.mubr.f32.gmra.mxu0 %v655
    %v729 = vpop.f32.mrf.mxu0
    %v730 = vadd.f32 0.0, %v729
    %v731 = vpop.f32.mrf.mxu0
    %v732 = vadd.f32 0.0, %v731
    %733 = vdwg.mxu0
    %734 = vmatprep.subr.mxu0 %v459
    %735 = vmatpush1.msra.mxu0 %v458
    %736 = vmatprep.subr.mxu0 %v455
    %737 = vmatpush1.msra.mxu0 %v454
    %738 = vmatprep.subr.mxu0 %v451
    %739 = vmatpush1.msra.mxu0 %v450
    %740 = vmatprep.subr.mxu0 %v447
    %741 = vmatpush1.msra.mxu0 %v446
    %742 = vmatprep.subr.mxu0 %v443
    %743 = vmatpush1.msra.mxu0 %v442
    %744 = vmatprep.subr.mxu0 %v439
    %745 = vmatpush1.msra.mxu0 %v438
    %746 = vmatprep.subr.mxu0 %v435
    %747 = vmatpush1.msra.mxu0 %v434
    %748 = vmatprep.subr.mxu0 %v431
    %749 = vmatpush1.msra.mxu0 %v430
    %750 = vmatprep.subr.mxu0 %v427
    %751 = vmatpush1.msra.mxu0 %v426
    %752 = vmatprep.subr.mxu0 %v423
    %753 = vmatpush1.msra.mxu0 %v422
    %754 = vmatprep.subr.mxu0 %v419
    %755 = vmatpush1.msra.mxu0 %v418
    %756 = vmatprep.subr.mxu0 %v415
    %757 = vmatpush1.msra.mxu0 %v414
    %758 = vmatprep.subr.mxu0 %v411
    %759 = vmatpush1.msra.mxu0 %v410
    %760 = vmatprep.subr.mxu0 %v407
    %761 = vmatpush1.msra.mxu0 %v406
    %762 = vmatprep.subr.mxu0 %v403
    %763 = vmatpush1.msra.mxu0 %v402
    %764 = vmatprep.subr.mxu0 %v399
    %765 = vmatpush1.msra.mxu0 %v398
    %766 = vmatprep.subr.mxu0 0.0
    %767 = vmatpush2.msra.mxu0 0.0
    %768 = vmatprep.subr.mxu0 0.0
    %769 = vmatpush2.msra.mxu0 0.0
    %770 = vmatprep.subr.mxu0 0.0
    %771 = vmatpush2.msra.mxu0 0.0
    %772 = vmatprep.subr.mxu0 0.0
    %773 = vmatpush2.msra.mxu0 0.0
    %774 = vmatprep.subr.mxu0 0.0
    %775 = vmatpush2.msra.mxu0 0.0
    %776 = vmatprep.subr.mxu0 0.0
    %777 = vmatpush2.msra.mxu0 0.0
    %778 = vmatprep.subr.mxu0 0.0
    %779 = vmatpush2.msra.mxu0 0.0
    %780 = vmatprep.subr.mxu0 0.0
    %781 = vmatpush2.msra.mxu0 0.0
    %782 = vmatprep.subr.mxu0 0.0
    %783 = vmatpush2.msra.mxu0 0.0
    %784 = vmatprep.subr.mxu0 0.0
    %785 = vmatpush2.msra.mxu0 0.0
    %786 = vmatprep.subr.mxu0 0.0
    %787 = vmatpush2.msra.mxu0 0.0
    %788 = vmatprep.subr.mxu0 0.0
    %789 = vmatpush2.msra.mxu0 0.0
    %790 = vmatprep.subr.mxu0 0.0
    %791 = vmatpush2.msra.mxu0 0.0
    %792 = vmatprep.subr.mxu0 0.0
    %793 = vmatpush2.msra.mxu0 0.0
    %794 = vmatprep.subr.mxu0 0.0
    %795 = vmatpush2.msra.mxu0 0.0
    %796 = vmatprep.subr.mxu0 0.0
    %797 = vmatpush2.msra.mxu0 0.0
    %798 = vmatprep.mubr.f32.mxu0 0.0
    %799 = vmatmul.mubr.f32.gmra.mxu0 %v655
    %v800 = vpop.f32.mrf.mxu0
    %v801 = vadd.f32 0.0, %v800
    %v802 = vpop.f32.mrf.mxu0
    %v803 = vadd.f32 0.0, %v802
    %804 = vdwg.mxu0
    %v805 = vadd.f32 %v659, %v730
    %v806 = vadd.f32 %v660, %v732
    %v807 = vadd.f32 %v661, %v801
    %v808 = vadd.f32 %v662, %v803
    %v809 = vadd.f32 %v805, %v611
    %v810 = vadd.f32 %v806, %v615
    %v811 = vadd.f32 %v807, %v619
    %v812 = vadd.f32 %v808, %v623
    %v813 = vxor.u32 %v809, 2147483648
    %v814 = vmul.f32 %v813, 1.442695
    %v815 = vpow.pop %v814
    %v816 = vadd.f32 %v815, 1.0
    %v817 = vrcp.pop %v816
    %v818 = vmul.f32 1.0, %v817
    %v819 = vxor.u32 %v810, 2147483648
    %v820 = vmul.f32 %v819, 1.442695
    %v821 = vpow.pop %v820
    %v822 = vadd.f32 %v821, 1.0
    %v823 = vrcp.pop %v822
    %v824 = vmul.f32 1.0, %v823
    %v825 = vtanh.pop %v811
    %v826 = vxor.u32 %v812, 2147483648
    %v827 = vmul.f32 %v826, 1.442695
    %v828 = vpow.pop %v827
    %v829 = vadd.f32 %v828, 1.0
    %v830 = vrcp.pop %v829
    %v831 = vmul.f32 1.0, %v830
    %v832 = vmul.f32 %v824, %v653
    %v833 = vmul.f32 %v818, %v825
    %v834 = vadd.f32 %v832, %v833
    %v835 = vtanh.pop %v834
    %v836 = vmul.f32 %v831, %v835
    %s837 = smul.u32 2, 4
    %s838 = smul.addr %s837, 8
    %s839 = scalar_lea.vmem [#allocation2], %s838
    %v840 = vld [vmem:[%s839] sm:$0xff]
    %v841 = vld [vmem:[%s839 + $0x8] sm:$0xff]
    %v842 = vld [vmem:[%s839 + $0x10] sm:$0xff]
    %v843 = vld [vmem:[%s839 + $0x18] sm:$0xff]
    %844 = vmatprep.subr.mxu0 %v457
    %845 = vmatpush1.msra.mxu0 %v456
    %846 = vmatprep.subr.mxu0 %v453
    %847 = vmatpush1.msra.mxu0 %v452
    %848 = vmatprep.subr.mxu0 %v449
    %849 = vmatpush1.msra.mxu0 %v448
    %850 = vmatprep.subr.mxu0 %v445
    %851 = vmatpush1.msra.mxu0 %v444
    %852 = vmatprep.subr.mxu0 %v441
    %853 = vmatpush1.msra.mxu0 %v440
    %854 = vmatprep.subr.mxu0 %v437
    %855 = vmatpush1.msra.mxu0 %v436
    %856 = vmatprep.subr.mxu0 %v433
    %857 = vmatpush1.msra.mxu0 %v432
    %858 = vmatprep.subr.mxu0 %v429
    %859 = vmatpush1.msra.mxu0 %v428
    %860 = vmatprep.subr.mxu0 %v425
    %861 = vmatpush1.msra.mxu0 %v424
    %862 = vmatprep.subr.mxu0 %v421
    %863 = vmatpush1.msra.mxu0 %v420
    %864 = vmatprep.subr.mxu0 %v417
    %865 = vmatpush1.msra.mxu0 %v416
    %866 = vmatprep.subr.mxu0 %v413
    %867 = vmatpush1.msra.mxu0 %v412
    %868 = vmatprep.subr.mxu0 %v409
    %869 = vmatpush1.msra.mxu0 %v408
    %870 = vmatprep.subr.mxu0 %v405
    %871 = vmatpush1.msra.mxu0 %v404
    %872 = vmatprep.subr.mxu0 %v401
    %873 = vmatpush1.msra.mxu0 %v400
    %874 = vmatprep.subr.mxu0 %v397
    %875 = vmatpush1.msra.mxu0 %v396
    %876 = vmatprep.subr.mxu0 0.0
    %877 = vmatpush2.msra.mxu0 0.0
    %878 = vmatprep.subr.mxu0 0.0
    %879 = vmatpush2.msra.mxu0 0.0
    %880 = vmatprep.subr.mxu0 0.0
    %881 = vmatpush2.msra.mxu0 0.0
    %882 = vmatprep.subr.mxu0 0.0
    %883 = vmatpush2.msra.mxu0 0.0
    %884 = vmatprep.subr.mxu0 0.0
    %885 = vmatpush2.msra.mxu0 0.0
    %886 = vmatprep.subr.mxu0 0.0
    %887 = vmatpush2.msra.mxu0 0.0
    %888 = vmatprep.subr.mxu0 0.0
    %889 = vmatpush2.msra.mxu0 0.0
    %890 = vmatprep.subr.mxu0 0.0
    %891 = vmatpush2.msra.mxu0 0.0
    %892 = vmatprep.subr.mxu0 0.0
    %893 = vmatpush2.msra.mxu0 0.0
    %894 = vmatprep.subr.mxu0 0.0
    %895 = vmatpush2.msra.mxu0 0.0
    %896 = vmatprep.subr.mxu0 0.0
    %897 = vmatpush2.msra.mxu0 0.0
    %898 = vmatprep.subr.mxu0 0.0
    %899 = vmatpush2.msra.mxu0 0.0
    %900 = vmatprep.subr.mxu0 0.0
    %901 = vmatpush2.msra.mxu0 0.0
    %902 = vmatprep.subr.mxu0 0.0
    %903 = vmatpush2.msra.mxu0 0.0
    %904 = vmatprep.subr.mxu0 0.0
    %905 = vmatpush2.msra.mxu0 0.0
    %906 = vmatprep.subr.mxu0 0.0
    %907 = vmatpush2.msra.mxu0 0.0
    %908 = vmatprep.mubr.f32.mxu0 0.0
    %909 = vmatmul.mubr.f32.gmra.mxu0 %v836
    %v910 = vpop.f32.mrf.mxu0
    %v911 = vadd.f32 0.0, %v910
    %v912 = vpop.f32.mrf.mxu0
    %v913 = vadd.f32 0.0, %v912
    %914 = vdwg.mxu0
    %915 = vmatprep.subr.mxu0 %v459
    %916 = vmatpush1.msra.mxu0 %v458
    %917 = vmatprep.subr.mxu0 %v455
    %918 = vmatpush1.msra.mxu0 %v454
    %919 = vmatprep.subr.mxu0 %v451
    %920 = vmatpush1.msra.mxu0 %v450
    %921 = vmatprep.subr.mxu0 %v447
    %922 = vmatpush1.msra.mxu0 %v446
    %923 = vmatprep.subr.mxu0 %v443
    %924 = vmatpush1.msra.mxu0 %v442
    %925 = vmatprep.subr.mxu0 %v439
    %926 = vmatpush1.msra.mxu0 %v438
    %927 = vmatprep.subr.mxu0 %v435
    %928 = vmatpush1.msra.mxu0 %v434
    %929 = vmatprep.subr.mxu0 %v431
    %930 = vmatpush1.msra.mxu0 %v430
    %931 = vmatprep.subr.mxu0 %v427
    %932 = vmatpush1.msra.mxu0 %v426
    %933 = vmatprep.subr.mxu0 %v423
    %934 = vmatpush1.msra.mxu0 %v422
    %935 = vmatprep.subr.mxu0 %v419
    %936 = vmatpush1.msra.mxu0 %v418
    %937 = vmatprep.subr.mxu0 %v415
    %938 = vmatpush1.msra.mxu0 %v414
    %939 = vmatprep.subr.mxu0 %v411
    %940 = vmatpush1.msra.mxu0 %v410
    %941 = vmatprep.subr.mxu0 %v407
    %942 = vmatpush1.msra.mxu0 %v406
    %943 = vmatprep.subr.mxu0 %v403
    %944 = vmatpush1.msra.mxu0 %v402
    %945 = vmatprep.subr.mxu0 %v399
    %946 = vmatpush1.msra.mxu0 %v398
    %947 = vmatprep.subr.mxu0 0.0
    %948 = vmatpush2.msra.mxu0 0.0
    %949 = vmatprep.subr.mxu0 0.0
    %950 = vmatpush2.msra.mxu0 0.0
    %951 = vmatprep.subr.mxu0 0.0
    %952 = vmatpush2.msra.mxu0 0.0
    %953 = vmatprep.subr.mxu0 0.0
    %954 = vmatpush2.msra.mxu0 0.0
    %955 = vmatprep.subr.mxu0 0.0
    %956 = vmatpush2.msra.mxu0 0.0
    %957 = vmatprep.subr.mxu0 0.0
    %958 = vmatpush2.msra.mxu0 0.0
    %959 = vmatprep.subr.mxu0 0.0
    %960 = vmatpush2.msra.mxu0 0.0
    %961 = vmatprep.subr.mxu0 0.0
    %962 = vmatpush2.msra.mxu0 0.0
    %963 = vmatprep.subr.mxu0 0.0
    %964 = vmatpush2.msra.mxu0 0.0
    %965 = vmatprep.subr.mxu0 0.0
    %966 = vmatpush2.msra.mxu0 0.0
    %967 = vmatprep.subr.mxu0 0.0
    %968 = vmatpush2.msra.mxu0 0.0
    %969 = vmatprep.subr.mxu0 0.0
    %970 = vmatpush2.msra.mxu0 0.0
    %971 = vmatprep.subr.mxu0 0.0
    %972 = vmatpush2.msra.mxu0 0.0
    %973 = vmatprep.subr.mxu0 0.0
    %974 = vmatpush2.msra.mxu0 0.0
    %975 = vmatprep.subr.mxu0 0.0
    %976 = vmatpush2.msra.mxu0 0.0
    %977 = vmatprep.subr.mxu0 0.0
    %978 = vmatpush2.msra.mxu0 0.0
    %979 = vmatprep.mubr.f32.mxu0 0.0
    %980 = vmatmul.mubr.f32.gmra.mxu0 %v836
    %v981 = vpop.f32.mrf.mxu0
    %v982 = vadd.f32 0.0, %v981
    %v983 = vpop.f32.mrf.mxu0
    %v984 = vadd.f32 0.0, %v983
    %985 = vdwg.mxu0
    %v986 = vadd.f32 %v840, %v911
    %v987 = vadd.f32 %v841, %v913
    %v988 = vadd.f32 %v842, %v982
    %v989 = vadd.f32 %v843, %v984
    %v990 = vadd.f32 %v986, %v611
    %v991 = vadd.f32 %v987, %v615
    %v992 = vadd.f32 %v988, %v619
    %v993 = vadd.f32 %v989, %v623
    %v994 = vxor.u32 %v990, 2147483648
    %v995 = vmul.f32 %v994, 1.442695
    %v996 = vpow.pop %v995
    %v997 = vadd.f32 %v996, 1.0
    %v998 = vrcp.pop %v997
    %v999 = vmul.f32 1.0, %v998
    %v1000 = vxor.u32 %v991, 2147483648
    %v1001 = vmul.f32 %v1000, 1.442695
    %v1002 = vpow.pop %v1001
    %v1003 = vadd.f32 %v1002, 1.0
    %v1004 = vrcp.pop %v1003
    %v1005 = vmul.f32 1.0, %v1004
    %v1006 = vtanh.pop %v992
    %v1007 = vxor.u32 %v993, 2147483648
    %v1008 = vmul.f32 %v1007, 1.442695
    %v1009 = vpow.pop %v1008
    %v1010 = vadd.f32 %v1009, 1.0
    %v1011 = vrcp.pop %v1010
    %v1012 = vmul.f32 1.0, %v1011
    %v1013 = vmul.f32 %v1005, %v834
    %v1014 = vmul.f32 %v999, %v1006
    %v1015 = vadd.f32 %v1013, %v1014
    %v1016 = vtanh.pop %v1015
    %v1017 = vmul.f32 %v1012, %v1016
    %s1018 = smul.u32 3, 4
    %s1019 = smul.addr %s1018, 8
    %s1020 = scalar_lea.vmem [#allocation2], %s1019
    %v1021 = vld [vmem:[%s1020] sm:$0xff]
    %v1022 = vld [vmem:[%s1020 + $0x8] sm:$0xff]
    %v1023 = vld [vmem:[%s1020 + $0x10] sm:$0xff]
    %v1024 = vld [vmem:[%s1020 + $0x18] sm:$0xff]
    %1025 = vmatprep.subr.mxu0 %v457
    %1026 = vmatpush1.msra.mxu0 %v456
    %1027 = vmatprep.subr.mxu0 %v453
    %1028 = vmatpush1.msra.mxu0 %v452
    %1029 = vmatprep.subr.mxu0 %v449
    %1030 = vmatpush1.msra.mxu0 %v448
    %1031 = vmatprep.subr.mxu0 %v445
    %1032 = vmatpush1.msra.mxu0 %v444
    %1033 = vmatprep.subr.mxu0 %v441
    %1034 = vmatpush1.msra.mxu0 %v440
    %1035 = vmatprep.subr.mxu0 %v437
    %1036 = vmatpush1.msra.mxu0 %v436
    %1037 = vmatprep.subr.mxu0 %v433
    %1038 = vmatpush1.msra.mxu0 %v432
    %1039 = vmatprep.subr.mxu0 %v429
    %1040 = vmatpush1.msra.mxu0 %v428
    %1041 = vmatprep.subr.mxu0 %v425
    %1042 = vmatpush1.msra.mxu0 %v424
    %1043 = vmatprep.subr.mxu0 %v421
    %1044 = vmatpush1.msra.mxu0 %v420
    %1045 = vmatprep.subr.mxu0 %v417
    %1046 = vmatpush1.msra.mxu0 %v416
    %1047 = vmatprep.subr.mxu0 %v413
    %1048 = vmatpush1.msra.mxu0 %v412
    %1049 = vmatprep.subr.mxu0 %v409
    %1050 = vmatpush1.msra.mxu0 %v408
    %1051 = vmatprep.subr.mxu0 %v405
    %1052 = vmatpush1.msra.mxu0 %v404
    %1053 = vmatprep.subr.mxu0 %v401
    %1054 = vmatpush1.msra.mxu0 %v400
    %1055 = vmatprep.subr.mxu0 %v397
    %1056 = vmatpush1.msra.mxu0 %v396
    %1057 = vmatprep.subr.mxu0 0.0
    %1058 = vmatpush2.msra.mxu0 0.0
    %1059 = vmatprep.subr.mxu0 0.0
    %1060 = vmatpush2.msra.mxu0 0.0
    %1061 = vmatprep.subr.mxu0 0.0
    %1062 = vmatpush2.msra.mxu0 0.0
    %1063 = vmatprep.subr.mxu0 0.0
    %1064 = vmatpush2.msra.mxu0 0.0
    %1065 = vmatprep.subr.mxu0 0.0
    %1066 = vmatpush2.msra.mxu0 0.0
    %1067 = vmatprep.subr.mxu0 0.0
    %1068 = vmatpush2.msra.mxu0 0.0
    %1069 = vmatprep.subr.mxu0 0.0
    %1070 = vmatpush2.msra.mxu0 0.0
    %1071 = vmatprep.subr.mxu0 0.0
    %1072 = vmatpush2.msra.mxu0 0.0
    %1073 = vmatprep.subr.mxu0 0.0
    %1074 = vmatpush2.msra.mxu0 0.0
    %1075 = vmatprep.subr.mxu0 0.0
    %1076 = vmatpush2.msra.mxu0 0.0
    %1077 = vmatprep.subr.mxu0 0.0
    %1078 = vmatpush2.msra.mxu0 0.0
    %1079 = vmatprep.subr.mxu0 0.0
    %1080 = vmatpush2.msra.mxu0 0.0
    %1081 = vmatprep.subr.mxu0 0.0
    %1082 = vmatpush2.msra.mxu0 0.0
    %1083 = vmatprep.subr.mxu0 0.0
    %1084 = vmatpush2.msra.mxu0 0.0
    %1085 = vmatprep.subr.mxu0 0.0
    %1086 = vmatpush2.msra.mxu0 0.0
    %1087 = vmatprep.subr.mxu0 0.0
    %1088 = vmatpush2.msra.mxu0 0.0
    %1089 = vmatprep.mubr.f32.mxu0 0.0
    %1090 = vmatmul.mubr.f32.gmra.mxu0 %v1017
    %v1091 = vpop.f32.mrf.mxu0
    %v1092 = vadd.f32 0.0, %v1091
    %v1093 = vpop.f32.mrf.mxu0
    %v1094 = vadd.f32 0.0, %v1093
    %1095 = vdwg.mxu0
    %1096 = vmatprep.subr.mxu0 %v459
    %1097 = vmatpush1.msra.mxu0 %v458
    %1098 = vmatprep.subr.mxu0 %v455
    %1099 = vmatpush1.msra.mxu0 %v454
    %1100 = vmatprep.subr.mxu0 %v451
    %1101 = vmatpush1.msra.mxu0 %v450
    %1102 = vmatprep.subr.mxu0 %v447
    %1103 = vmatpush1.msra.mxu0 %v446
    %1104 = vmatprep.subr.mxu0 %v443
    %1105 = vmatpush1.msra.mxu0 %v442
    %1106 = vmatprep.subr.mxu0 %v439
    %1107 = vmatpush1.msra.mxu0 %v438
    %1108 = vmatprep.subr.mxu0 %v435
    %1109 = vmatpush1.msra.mxu0 %v434
    %1110 = vmatprep.subr.mxu0 %v431
    %1111 = vmatpush1.msra.mxu0 %v430
    %1112 = vmatprep.subr.mxu0 %v427
    %1113 = vmatpush1.msra.mxu0 %v426
    %1114 = vmatprep.subr.mxu0 %v423
    %1115 = vmatpush1.msra.mxu0 %v422
    %1116 = vmatprep.subr.mxu0 %v419
    %1117 = vmatpush1.msra.mxu0 %v418
    %1118 = vmatprep.subr.mxu0 %v415
    %1119 = vmatpush1.msra.mxu0 %v414
    %1120 = vmatprep.subr.mxu0 %v411
    %1121 = vmatpush1.msra.mxu0 %v410
    %1122 = vmatprep.subr.mxu0 %v407
    %1123 = vmatpush1.msra.mxu0 %v406
    %1124 = vmatprep.subr.mxu0 %v403
    %1125 = vmatpush1.msra.mxu0 %v402
    %1126 = vmatprep.subr.mxu0 %v399
    %1127 = vmatpush1.msra.mxu0 %v398
    %1128 = vmatprep.subr.mxu0 0.0
    %1129 = vmatpush2.msra.mxu0 0.0
    %1130 = vmatprep.subr.mxu0 0.0
    %1131 = vmatpush2.msra.mxu0 0.0
    %1132 = vmatprep.subr.mxu0 0.0
    %1133 = vmatpush2.msra.mxu0 0.0
    %1134 = vmatprep.subr.mxu0 0.0
    %1135 = vmatpush2.msra.mxu0 0.0
    %1136 = vmatprep.subr.mxu0 0.0
    %1137 = vmatpush2.msra.mxu0 0.0
    %1138 = vmatprep.subr.mxu0 0.0
    %1139 = vmatpush2.msra.mxu0 0.0
    %1140 = vmatprep.subr.mxu0 0.0
    %1141 = vmatpush2.msra.mxu0 0.0
    %1142 = vmatprep.subr.mxu0 0.0
    %1143 = vmatpush2.msra.mxu0 0.0
    %1144 = vmatprep.subr.mxu0 0.0
    %1145 = vmatpush2.msra.mxu0 0.0
    %1146 = vmatprep.subr.mxu0 0.0
    %1147 = vmatpush2.msra.mxu0 0.0
    %1148 = vmatprep.subr.mxu0 0.0
    %1149 = vmatpush2.msra.mxu0 0.0
    %1150 = vmatprep.subr.mxu0 0.0
    %1151 = vmatpush2.msra.mxu0 0.0
    %1152 = vmatprep.subr.mxu0 0.0
    %1153 = vmatpush2.msra.mxu0 0.0
    %1154 = vmatprep.subr.mxu0 0.0
    %1155 = vmatpush2.msra.mxu0 0.0
    %1156 = vmatprep.subr.mxu0 0.0
    %1157 = vmatpush2.msra.mxu0 0.0
    %1158 = vmatprep.subr.mxu0 0.0
    %1159 = vmatpush2.msra.mxu0 0.0
    %1160 = vmatprep.mubr.f32.mxu0 0.0
    %1161 = vmatmul.mubr.f32.gmra.mxu0 %v1017
    %v1162 = vpop.f32.mrf.mxu0
    %v1163 = vadd.f32 0.0, %v1162
    %v1164 = vpop.f32.mrf.mxu0
    %v1165 = vadd.f32 0.0, %v1164
    %1166 = vdwg.mxu0
    %v1167 = vadd.f32 %v1021, %v1092
    %v1168 = vadd.f32 %v1022, %v1094
    %v1169 = vadd.f32 %v1023, %v1163
    %v1170 = vadd.f32 %v1024, %v1165
    %v1171 = vadd.f32 %v1167, %v611
    %v1172 = vadd.f32 %v1168, %v615
    %v1173 = vadd.f32 %v1169, %v619
    %v1174 = vadd.f32 %v1170, %v623
    %v1175 = vxor.u32 %v1171, 2147483648
    %v1176 = vmul.f32 %v1175, 1.442695
    %v1177 = vpow.pop %v1176
    %v1178 = vadd.f32 %v1177, 1.0
    %v1179 = vrcp.pop %v1178
    %v1180 = vmul.f32 1.0, %v1179
    %v1181 = vxor.u32 %v1172, 2147483648
    %v1182 = vmul.f32 %v1181, 1.442695
    %v1183 = vpow.pop %v1182
    %v1184 = vadd.f32 %v1183, 1.0
    %v1185 = vrcp.pop %v1184
    %v1186 = vmul.f32 1.0, %v1185
    %v1187 = vtanh.pop %v1173
    %v1188 = vxor.u32 %v1174, 2147483648
    %v1189 = vmul.f32 %v1188, 1.442695
    %v1190 = vpow.pop %v1189
    %v1191 = vadd.f32 %v1190, 1.0
    %v1192 = vrcp.pop %v1191
    %v1193 = vmul.f32 1.0, %v1192
    %v1194 = vmul.f32 %v1186, %v1015
    %v1195 = vmul.f32 %v1180, %v1187
    %v1196 = vadd.f32 %v1194, %v1195
    %v1197 = vtanh.pop %v1196
    %v1198 = vmul.f32 %v1193, %v1197
    %s1199 = smul.u32 4, 4
    %s1200 = smul.addr %s1199, 8
    %s1201 = scalar_lea.vmem [#allocation2], %s1200
    %v1202 = vld [vmem:[%s1201] sm:$0xff]
    %v1203 = vld [vmem:[%s1201 + $0x8] sm:$0xff]
    %v1204 = vld [vmem:[%s1201 + $0x10] sm:$0xff]
    %v1205 = vld [vmem:[%s1201 + $0x18] sm:$0xff]
    %1206 = vmatprep.subr.mxu0 %v457
    %1207 = vmatpush1.msra.mxu0 %v456
    %1208 = vmatprep.subr.mxu0 %v453
    %1209 = vmatpush1.msra.mxu0 %v452
    %1210 = vmatprep.subr.mxu0 %v449
    %1211 = vmatpush1.msra.mxu0 %v448
    %1212 = vmatprep.subr.mxu0 %v445
    %1213 = vmatpush1.msra.mxu0 %v444
    %1214 = vmatprep.subr.mxu0 %v441
    %1215 = vmatpush1.msra.mxu0 %v440
    %1216 = vmatprep.subr.mxu0 %v437
    %1217 = vmatpush1.msra.mxu0 %v436
    %1218 = vmatprep.subr.mxu0 %v433
    %1219 = vmatpush1.msra.mxu0 %v432
    %1220 = vmatprep.subr.mxu0 %v429
    %1221 = vmatpush1.msra.mxu0 %v428
    %1222 = vmatprep.subr.mxu0 %v425
    %1223 = vmatpush1.msra.mxu0 %v424
    %1224 = vmatprep.subr.mxu0 %v421
    %1225 = vmatpush1.msra.mxu0 %v420
    %1226 = vmatprep.subr.mxu0 %v417
    %1227 = vmatpush1.msra.mxu0 %v416
    %1228 = vmatprep.subr.mxu0 %v413
    %1229 = vmatpush1.msra.mxu0 %v412
    %1230 = vmatprep.subr.mxu0 %v409
    %1231 = vmatpush1.msra.mxu0 %v408
    %1232 = vmatprep.subr.mxu0 %v405
    %1233 = vmatpush1.msra.mxu0 %v404
    %1234 = vmatprep.subr.mxu0 %v401
    %1235 = vmatpush1.msra.mxu0 %v400
    %1236 = vmatprep.subr.mxu0 %v397
    %1237 = vmatpush1.msra.mxu0 %v396
    %1238 = vmatprep.subr.mxu0 0.0
    %1239 = vmatpush2.msra.mxu0 0.0
    %1240 = vmatprep.subr.mxu0 0.0
    %1241 = vmatpush2.msra.mxu0 0.0
    %1242 = vmatprep.subr.mxu0 0.0
    %1243 = vmatpush2.msra.mxu0 0.0
    %1244 = vmatprep.subr.mxu0 0.0
    %1245 = vmatpush2.msra.mxu0 0.0
    %1246 = vmatprep.subr.mxu0 0.0
    %1247 = vmatpush2.msra.mxu0 0.0
    %1248 = vmatprep.subr.mxu0 0.0
    %1249 = vmatpush2.msra.mxu0 0.0
    %1250 = vmatprep.subr.mxu0 0.0
    %1251 = vmatpush2.msra.mxu0 0.0
    %1252 = vmatprep.subr.mxu0 0.0
    %1253 = vmatpush2.msra.mxu0 0.0
    %1254 = vmatprep.subr.mxu0 0.0
    %1255 = vmatpush2.msra.mxu0 0.0
    %1256 = vmatprep.subr.mxu0 0.0
    %1257 = vmatpush2.msra.mxu0 0.0
    %1258 = vmatprep.subr.mxu0 0.0
    %1259 = vmatpush2.msra.mxu0 0.0
    %1260 = vmatprep.subr.mxu0 0.0
    %1261 = vmatpush2.msra.mxu0 0.0
    %1262 = vmatprep.subr.mxu0 0.0
    %1263 = vmatpush2.msra.mxu0 0.0
    %1264 = vmatprep.subr.mxu0 0.0
    %1265 = vmatpush2.msra.mxu0 0.0
    %1266 = vmatprep.subr.mxu0 0.0
    %1267 = vmatpush2.msra.mxu0 0.0
    %1268 = vmatprep.subr.mxu0 0.0
    %1269 = vmatpush2.msra.mxu0 0.0
    %1270 = vmatprep.mubr.f32.mxu0 0.0
    %1271 = vmatmul.mubr.f32.gmra.mxu0 %v1198
    %v1272 = vpop.f32.mrf.mxu0
    %v1273 = vadd.f32 0.0, %v1272
    %v1274 = vpop.f32.mrf.mxu0
    %v1275 = vadd.f32 0.0, %v1274
    %1276 = vdwg.mxu0
    %1277 = vmatprep.subr.mxu0 %v459
    %1278 = vmatpush1.msra.mxu0 %v458
    %1279 = vmatprep.subr.mxu0 %v455
    %1280 = vmatpush1.msra.mxu0 %v454
    %1281 = vmatprep.subr.mxu0 %v451
    %1282 = vmatpush1.msra.mxu0 %v450
    %1283 = vmatprep.subr.mxu0 %v447
    %1284 = vmatpush1.msra.mxu0 %v446
    %1285 = vmatprep.subr.mxu0 %v443
    %1286 = vmatpush1.msra.mxu0 %v442
    %1287 = vmatprep.subr.mxu0 %v439
    %1288 = vmatpush1.msra.mxu0 %v438
    %1289 = vmatprep.subr.mxu0 %v435
    %1290 = vmatpush1.msra.mxu0 %v434
    %1291 = vmatprep.subr.mxu0 %v431
    %1292 = vmatpush1.msra.mxu0 %v430
    %1293 = vmatprep.subr.mxu0 %v427
    %1294 = vmatpush1.msra.mxu0 %v426
    %1295 = vmatprep.subr.mxu0 %v423
    %1296 = vmatpush1.msra.mxu0 %v422
    %1297 = vmatprep.subr.mxu0 %v419
    %1298 = vmatpush1.msra.mxu0 %v418
    %1299 = vmatprep.subr.mxu0 %v415
    %1300 = vmatpush1.msra.mxu0 %v414
    %1301 = vmatprep.subr.mxu0 %v411
    %1302 = vmatpush1.msra.mxu0 %v410
    %1303 = vmatprep.subr.mxu0 %v407
    %1304 = vmatpush1.msra.mxu0 %v406
    %1305 = vmatprep.subr.mxu0 %v403
    %1306 = vmatpush1.msra.mxu0 %v402
    %1307 = vmatprep.subr.mxu0 %v399
    %1308 = vmatpush1.msra.mxu0 %v398
    %1309 = vmatprep.subr.mxu0 0.0
    %1310 = vmatpush2.msra.mxu0 0.0
    %1311 = vmatprep.subr.mxu0 0.0
    %1312 = vmatpush2.msra.mxu0 0.0
    %1313 = vmatprep.subr.mxu0 0.0
    %1314 = vmatpush2.msra.mxu0 0.0
    %1315 = vmatprep.subr.mxu0 0.0
    %1316 = vmatpush2.msra.mxu0 0.0
    %1317 = vmatprep.subr.mxu0 0.0
    %1318 = vmatpush2.msra.mxu0 0.0
    %1319 = vmatprep.subr.mxu0 0.0
    %1320 = vmatpush2.msra.mxu0 0.0
    %1321 = vmatprep.subr.mxu0 0.0
    %1322 = vmatpush2.msra.mxu0 0.0
    %1323 = vmatprep.subr.mxu0 0.0
    %1324 = vmatpush2.msra.mxu0 0.0
    %1325 = vmatprep.subr.mxu0 0.0
    %1326 = vmatpush2.msra.mxu0 0.0
    %1327 = vmatprep.subr.mxu0 0.0
    %1328 = vmatpush2.msra.mxu0 0.0
    %1329 = vmatprep.subr.mxu0 0.0
    %1330 = vmatpush2.msra.mxu0 0.0
    %1331 = vmatprep.subr.mxu0 0.0
    %1332 = vmatpush2.msra.mxu0 0.0
    %1333 = vmatprep.subr.mxu0 0.0
    %1334 = vmatpush2.msra.mxu0 0.0
    %1335 = vmatprep.subr.mxu0 0.0
    %1336 = vmatpush2.msra.mxu0 0.0
    %1337 = vmatprep.subr.mxu0 0.0
    %1338 = vmatpush2.msra.mxu0 0.0
    %1339 = vmatprep.subr.mxu0 0.0
    %1340 = vmatpush2.msra.mxu0 0.0
    %1341 = vmatprep.mubr.f32.mxu0 0.0
    %1342 = vmatmul.mubr.f32.gmra.mxu0 %v1198
    %v1343 = vpop.f32.mrf.mxu0
    %v1344 = vadd.f32 0.0, %v1343
    %v1345 = vpop.f32.mrf.mxu0
    %v1346 = vadd.f32 0.0, %v1345
    %1347 = vdwg.mxu0
    %v1348 = vadd.f32 %v1202, %v1273
    %v1349 = vadd.f32 %v1203, %v1275
    %v1350 = vadd.f32 %v1204, %v1344
    %v1351 = vadd.f32 %v1205, %v1346
    %v1352 = vadd.f32 %v1348, %v611
    %v1353 = vadd.f32 %v1349, %v615
    %v1354 = vadd.f32 %v1350, %v619
    %v1355 = vadd.f32 %v1351, %v623
    %v1356 = vxor.u32 %v1352, 2147483648
    %v1357 = vmul.f32 %v1356, 1.442695
    %v1358 = vpow.pop %v1357
    %v1359 = vadd.f32 %v1358, 1.0
    %v1360 = vrcp.pop %v1359
    %v1361 = vmul.f32 1.0, %v1360
    %v1362 = vxor.u32 %v1353, 2147483648
    %v1363 = vmul.f32 %v1362, 1.442695
    %v1364 = vpow.pop %v1363
    %v1365 = vadd.f32 %v1364, 1.0
    %v1366 = vrcp.pop %v1365
    %v1367 = vmul.f32 1.0, %v1366
    %v1368 = vtanh.pop %v1354
    %v1369 = vxor.u32 %v1355, 2147483648
    %v1370 = vmul.f32 %v1369, 1.442695
    %v1371 = vpow.pop %v1370
    %v1372 = vadd.f32 %v1371, 1.0
    %v1373 = vrcp.pop %v1372
    %v1374 = vmul.f32 1.0, %v1373
    %v1375 = vmul.f32 %v1367, %v1196
    %v1376 = vmul.f32 %v1361, %v1368
    %v1377 = vadd.f32 %v1375, %v1376
    %v1378 = vtanh.pop %v1377
    %v1379 = vmul.f32 %v1374, %v1378
    %s1380 = smul.u32 5, 4
    %s1381 = smul.addr %s1380, 8
    %s1382 = scalar_lea.vmem [#allocation2], %s1381
    %v1383 = vld [vmem:[%s1382] sm:$0xff]
    %v1384 = vld [vmem:[%s1382 + $0x8] sm:$0xff]
    %v1385 = vld [vmem:[%s1382 + $0x10] sm:$0xff]
    %v1386 = vld [vmem:[%s1382 + $0x18] sm:$0xff]
    %1387 = vmatprep.subr.mxu0 %v457
    %1388 = vmatpush1.msra.mxu0 %v456
    %1389 = vmatprep.subr.mxu0 %v453
    %1390 = vmatpush1.msra.mxu0 %v452
    %1391 = vmatprep.subr.mxu0 %v449
    %1392 = vmatpush1.msra.mxu0 %v448
    %1393 = vmatprep.subr.mxu0 %v445
    %1394 = vmatpush1.msra.mxu0 %v444
    %1395 = vmatprep.subr.mxu0 %v441
    %1396 = vmatpush1.msra.mxu0 %v440
    %1397 = vmatprep.subr.mxu0 %v437
    %1398 = vmatpush1.msra.mxu0 %v436
    %1399 = vmatprep.subr.mxu0 %v433
    %1400 = vmatpush1.msra.mxu0 %v432
    %1401 = vmatprep.subr.mxu0 %v429
    %1402 = vmatpush1.msra.mxu0 %v428
    %1403 = vmatprep.subr.mxu0 %v425
    %1404 = vmatpush1.msra.mxu0 %v424
    %1405 = vmatprep.subr.mxu0 %v421
    %1406 = vmatpush1.msra.mxu0 %v420
    %1407 = vmatprep.subr.mxu0 %v417
    %1408 = vmatpush1.msra.mxu0 %v416
    %1409 = vmatprep.subr.mxu0 %v413
    %1410 = vmatpush1.msra.mxu0 %v412
    %1411 = vmatprep.subr.mxu0 %v409
    %1412 = vmatpush1.msra.mxu0 %v408
    %1413 = vmatprep.subr.mxu0 %v405
    %1414 = vmatpush1.msra.mxu0 %v404
    %1415 = vmatprep.subr.mxu0 %v401
    %1416 = vmatpush1.msra.mxu0 %v400
    %1417 = vmatprep.subr.mxu0 %v397
    %1418 = vmatpush1.msra.mxu0 %v396
    %1419 = vmatprep.subr.mxu0 0.0
    %1420 = vmatpush2.msra.mxu0 0.0
    %1421 = vmatprep.subr.mxu0 0.0
    %1422 = vmatpush2.msra.mxu0 0.0
    %1423 = vmatprep.subr.mxu0 0.0
    %1424 = vmatpush2.msra.mxu0 0.0
    %1425 = vmatprep.subr.mxu0 0.0
    %1426 = vmatpush2.msra.mxu0 0.0
    %1427 = vmatprep.subr.mxu0 0.0
    %1428 = vmatpush2.msra.mxu0 0.0
    %1429 = vmatprep.subr.mxu0 0.0
    %1430 = vmatpush2.msra.mxu0 0.0
    %1431 = vmatprep.subr.mxu0 0.0
    %1432 = vmatpush2.msra.mxu0 0.0
    %1433 = vmatprep.subr.mxu0 0.0
    %1434 = vmatpush2.msra.mxu0 0.0
    %1435 = vmatprep.subr.mxu0 0.0
    %1436 = vmatpush2.msra.mxu0 0.0
    %1437 = vmatprep.subr.mxu0 0.0
    %1438 = vmatpush2.msra.mxu0 0.0
    %1439 = vmatprep.subr.mxu0 0.0
    %1440 = vmatpush2.msra.mxu0 0.0
    %1441 = vmatprep.subr.mxu0 0.0
    %1442 = vmatpush2.msra.mxu0 0.0
    %1443 = vmatprep.subr.mxu0 0.0
    %1444 = vmatpush2.msra.mxu0 0.0
    %1445 = vmatprep.subr.mxu0 0.0
    %1446 = vmatpush2.msra.mxu0 0.0
    %1447 = vmatprep.subr.mxu0 0.0
    %1448 = vmatpush2.msra.mxu0 0.0
    %1449 = vmatprep.subr.mxu0 0.0
    %1450 = vmatpush2.msra.mxu0 0.0
    %1451 = vmatprep.mubr.f32.mxu0 0.0
    %1452 = vmatmul.mubr.f32.gmra.mxu0 %v1379
    %v1453 = vpop.f32.mrf.mxu0
    %v1454 = vadd.f32 0.0, %v1453
    %v1455 = vpop.f32.mrf.mxu0
    %v1456 = vadd.f32 0.0, %v1455
    %1457 = vdwg.mxu0
    %1458 = vmatprep.subr.mxu0 %v459
    %1459 = vmatpush1.msra.mxu0 %v458
    %1460 = vmatprep.subr.mxu0 %v455
    %1461 = vmatpush1.msra.mxu0 %v454
    %1462 = vmatprep.subr.mxu0 %v451
    %1463 = vmatpush1.msra.mxu0 %v450
    %1464 = vmatprep.subr.mxu0 %v447
    %1465 = vmatpush1.msra.mxu0 %v446
    %1466 = vmatprep.subr.mxu0 %v443
    %1467 = vmatpush1.msra.mxu0 %v442
    %1468 = vmatprep.subr.mxu0 %v439
    %1469 = vmatpush1.msra.mxu0 %v438
    %1470 = vmatprep.subr.mxu0 %v435
    %1471 = vmatpush1.msra.mxu0 %v434
    %1472 = vmatprep.subr.mxu0 %v431
    %1473 = vmatpush1.msra.mxu0 %v430
    %1474 = vmatprep.subr.mxu0 %v427
    %1475 = vmatpush1.msra.mxu0 %v426
    %1476 = vmatprep.subr.mxu0 %v423
    %1477 = vmatpush1.msra.mxu0 %v422
    %1478 = vmatprep.subr.mxu0 %v419
    %1479 = vmatpush1.msra.mxu0 %v418
    %1480 = vmatprep.subr.mxu0 %v415
    %1481 = vmatpush1.msra.mxu0 %v414
    %1482 = vmatprep.subr.mxu0 %v411
    %1483 = vmatpush1.msra.mxu0 %v410
    %1484 = vmatprep.subr.mxu0 %v407
    %1485 = vmatpush1.msra.mxu0 %v406
    %1486 = vmatprep.subr.mxu0 %v403
    %1487 = vmatpush1.msra.mxu0 %v402
    %1488 = vmatprep.subr.mxu0 %v399
    %1489 = vmatpush1.msra.mxu0 %v398
    %1490 = vmatprep.subr.mxu0 0.0
    %1491 = vmatpush2.msra.mxu0 0.0
    %1492 = vmatprep.subr.mxu0 0.0
    %1493 = vmatpush2.msra.mxu0 0.0
    %1494 = vmatprep.subr.mxu0 0.0
    %1495 = vmatpush2.msra.mxu0 0.0
    %1496 = vmatprep.subr.mxu0 0.0
    %1497 = vmatpush2.msra.mxu0 0.0
    %1498 = vmatprep.subr.mxu0 0.0
    %1499 = vmatpush2.msra.mxu0 0.0
    %1500 = vmatprep.subr.mxu0 0.0
    %1501 = vmatpush2.msra.mxu0 0.0
    %1502 = vmatprep.subr.mxu0 0.0
    %1503 = vmatpush2.msra.mxu0 0.0
    %1504 = vmatprep.subr.mxu0 0.0
    %1505 = vmatpush2.msra.mxu0 0.0
    %1506 = vmatprep.subr.mxu0 0.0
    %1507 = vmatpush2.msra.mxu0 0.0
    %1508 = vmatprep.subr.mxu0 0.0
    %1509 = vmatpush2.msra.mxu0 0.0
    %1510 = vmatprep.subr.mxu0 0.0
    %1511 = vmatpush2.msra.mxu0 0.0
    %1512 = vmatprep.subr.mxu0 0.0
    %1513 = vmatpush2.msra.mxu0 0.0
    %1514 = vmatprep.subr.mxu0 0.0
    %1515 = vmatpush2.msra.mxu0 0.0
    %1516 = vmatprep.subr.mxu0 0.0
    %1517 = vmatpush2.msra.mxu0 0.0
    %1518 = vmatprep.subr.mxu0 0.0
    %1519 = vmatpush2.msra.mxu0 0.0
    %1520 = vmatprep.subr.mxu0 0.0
    %1521 = vmatpush2.msra.mxu0 0.0
    %1522 = vmatprep.mubr.f32.mxu0 0.0
    %1523 = vmatmul.mubr.f32.gmra.mxu0 %v1379
    %v1524 = vpop.f32.mrf.mxu0
    %v1525 = vadd.f32 0.0, %v1524
    %v1526 = vpop.f32.mrf.mxu0
    %v1527 = vadd.f32 0.0, %v1526
    %1528 = vdwg.mxu0
    %v1529 = vadd.f32 %v1383, %v1454
    %v1530 = vadd.f32 %v1384, %v1456
    %v1531 = vadd.f32 %v1385, %v1525
    %v1532 = vadd.f32 %v1386, %v1527
    %v1533 = vadd.f32 %v1529, %v611
    %v1534 = vadd.f32 %v1530, %v615
    %v1535 = vadd.f32 %v1531, %v619
    %v1536 = vadd.f32 %v1532, %v623
    %v1537 = vxor.u32 %v1533, 2147483648
    %v1538 = vmul.f32 %v1537, 1.442695
    %v1539 = vpow.pop %v1538
    %v1540 = vadd.f32 %v1539, 1.0
    %v1541 = vrcp.pop %v1540
    %v1542 = vmul.f32 1.0, %v1541
    %v1543 = vxor.u32 %v1534, 2147483648
    %v1544 = vmul.f32 %v1543, 1.442695
    %v1545 = vpow.pop %v1544
    %v1546 = vadd.f32 %v1545, 1.0
    %v1547 = vrcp.pop %v1546
    %v1548 = vmul.f32 1.0, %v1547
    %v1549 = vtanh.pop %v1535
    %v1550 = vxor.u32 %v1536, 2147483648
    %v1551 = vmul.f32 %v1550, 1.442695
    %v1552 = vpow.pop %v1551
    %v1553 = vadd.f32 %v1552, 1.0
    %v1554 = vrcp.pop %v1553
    %v1555 = vmul.f32 1.0, %v1554
    %v1556 = vmul.f32 %v1548, %v1377
    %v1557 = vmul.f32 %v1542, %v1549
    %v1558 = vadd.f32 %v1556, %v1557
    %v1559 = vtanh.pop %v1558
    %v1560 = vmul.f32 %v1555, %v1559
    %s1561 = smul.u32 6, 4
    %s1562 = smul.addr %s1561, 8
    %s1563 = scalar_lea.vmem [#allocation2], %s1562
    %v1564 = vld [vmem:[%s1563] sm:$0xff]
    %v1565 = vld [vmem:[%s1563 + $0x8] sm:$0xff]
    %v1566 = vld [vmem:[%s1563 + $0x10] sm:$0xff]
    %v1567 = vld [vmem:[%s1563 + $0x18] sm:$0xff]
    %1568 = vmatprep.subr.mxu0 %v457
    %1569 = vmatpush1.msra.mxu0 %v456
    %1570 = vmatprep.subr.mxu0 %v453
    %1571 = vmatpush1.msra.mxu0 %v452
    %1572 = vmatprep.subr.mxu0 %v449
    %1573 = vmatpush1.msra.mxu0 %v448
    %1574 = vmatprep.subr.mxu0 %v445
    %1575 = vmatpush1.msra.mxu0 %v444
    %1576 = vmatprep.subr.mxu0 %v441
    %1577 = vmatpush1.msra.mxu0 %v440
    %1578 = vmatprep.subr.mxu0 %v437
    %1579 = vmatpush1.msra.mxu0 %v436
    %1580 = vmatprep.subr.mxu0 %v433
    %1581 = vmatpush1.msra.mxu0 %v432
    %1582 = vmatprep.subr.mxu0 %v429
    %1583 = vmatpush1.msra.mxu0 %v428
    %1584 = vmatprep.subr.mxu0 %v425
    %1585 = vmatpush1.msra.mxu0 %v424
    %1586 = vmatprep.subr.mxu0 %v421
    %1587 = vmatpush1.msra.mxu0 %v420
    %1588 = vmatprep.subr.mxu0 %v417
    %1589 = vmatpush1.msra.mxu0 %v416
    %1590 = vmatprep.subr.mxu0 %v413
    %1591 = vmatpush1.msra.mxu0 %v412
    %1592 = vmatprep.subr.mxu0 %v409
    %1593 = vmatpush1.msra.mxu0 %v408
    %1594 = vmatprep.subr.mxu0 %v405
    %1595 = vmatpush1.msra.mxu0 %v404
    %1596 = vmatprep.subr.mxu0 %v401
    %1597 = vmatpush1.msra.mxu0 %v400
    %1598 = vmatprep.subr.mxu0 %v397
    %1599 = vmatpush1.msra.mxu0 %v396
    %1600 = vmatprep.subr.mxu0 0.0
    %1601 = vmatpush2.msra.mxu0 0.0
    %1602 = vmatprep.subr.mxu0 0.0
    %1603 = vmatpush2.msra.mxu0 0.0
    %1604 = vmatprep.subr.mxu0 0.0
    %1605 = vmatpush2.msra.mxu0 0.0
    %1606 = vmatprep.subr.mxu0 0.0
    %1607 = vmatpush2.msra.mxu0 0.0
    %1608 = vmatprep.subr.mxu0 0.0
    %1609 = vmatpush2.msra.mxu0 0.0
    %1610 = vmatprep.subr.mxu0 0.0
    %1611 = vmatpush2.msra.mxu0 0.0
    %1612 = vmatprep.subr.mxu0 0.0
    %1613 = vmatpush2.msra.mxu0 0.0
    %1614 = vmatprep.subr.mxu0 0.0
    %1615 = vmatpush2.msra.mxu0 0.0
    %1616 = vmatprep.subr.mxu0 0.0
    %1617 = vmatpush2.msra.mxu0 0.0
    %1618 = vmatprep.subr.mxu0 0.0
    %1619 = vmatpush2.msra.mxu0 0.0
    %1620 = vmatprep.subr.mxu0 0.0
    %1621 = vmatpush2.msra.mxu0 0.0
    %1622 = vmatprep.subr.mxu0 0.0
    %1623 = vmatpush2.msra.mxu0 0.0
    %1624 = vmatprep.subr.mxu0 0.0
    %1625 = vmatpush2.msra.mxu0 0.0
    %1626 = vmatprep.subr.mxu0 0.0
    %1627 = vmatpush2.msra.mxu0 0.0
    %1628 = vmatprep.subr.mxu0 0.0
    %1629 = vmatpush2.msra.mxu0 0.0
    %1630 = vmatprep.subr.mxu0 0.0
    %1631 = vmatpush2.msra.mxu0 0.0
    %1632 = vmatprep.mubr.f32.mxu0 0.0
    %1633 = vmatmul.mubr.f32.gmra.mxu0 %v1560
    %v1634 = vpop.f32.mrf.mxu0
    %v1635 = vadd.f32 0.0, %v1634
    %v1636 = vpop.f32.mrf.mxu0
    %v1637 = vadd.f32 0.0, %v1636
    %1638 = vdwg.mxu0
    %1639 = vmatprep.subr.mxu0 %v459
    %1640 = vmatpush1.msra.mxu0 %v458
    %1641 = vmatprep.subr.mxu0 %v455
    %1642 = vmatpush1.msra.mxu0 %v454
    %1643 = vmatprep.subr.mxu0 %v451
    %1644 = vmatpush1.msra.mxu0 %v450
    %1645 = vmatprep.subr.mxu0 %v447
    %1646 = vmatpush1.msra.mxu0 %v446
    %1647 = vmatprep.subr.mxu0 %v443
    %1648 = vmatpush1.msra.mxu0 %v442
    %1649 = vmatprep.subr.mxu0 %v439
    %1650 = vmatpush1.msra.mxu0 %v438
    %1651 = vmatprep.subr.mxu0 %v435
    %1652 = vmatpush1.msra.mxu0 %v434
    %1653 = vmatprep.subr.mxu0 %v431
    %1654 = vmatpush1.msra.mxu0 %v430
    %1655 = vmatprep.subr.mxu0 %v427
    %1656 = vmatpush1.msra.mxu0 %v426
    %1657 = vmatprep.subr.mxu0 %v423
    %1658 = vmatpush1.msra.mxu0 %v422
    %1659 = vmatprep.subr.mxu0 %v419
    %1660 = vmatpush1.msra.mxu0 %v418
    %1661 = vmatprep.subr.mxu0 %v415
    %1662 = vmatpush1.msra.mxu0 %v414
    %1663 = vmatprep.subr.mxu0 %v411
    %1664 = vmatpush1.msra.mxu0 %v410
    %1665 = vmatprep.subr.mxu0 %v407
    %1666 = vmatpush1.msra.mxu0 %v406
    %1667 = vmatprep.subr.mxu0 %v403
    %1668 = vmatpush1.msra.mxu0 %v402
    %1669 = vmatprep.subr.mxu0 %v399
    %1670 = vmatpush1.msra.mxu0 %v398
    %1671 = vmatprep.subr.mxu0 0.0
    %1672 = vmatpush2.msra.mxu0 0.0
    %1673 = vmatprep.subr.mxu0 0.0
    %1674 = vmatpush2.msra.mxu0 0.0
    %1675 = vmatprep.subr.mxu0 0.0
    %1676 = vmatpush2.msra.mxu0 0.0
    %1677 = vmatprep.subr.mxu0 0.0
    %1678 = vmatpush2.msra.mxu0 0.0
    %1679 = vmatprep.subr.mxu0 0.0
    %1680 = vmatpush2.msra.mxu0 0.0
    %1681 = vmatprep.subr.mxu0 0.0
    %1682 = vmatpush2.msra.mxu0 0.0
    %1683 = vmatprep.subr.mxu0 0.0
    %1684 = vmatpush2.msra.mxu0 0.0
    %1685 = vmatprep.subr.mxu0 0.0
    %1686 = vmatpush2.msra.mxu0 0.0
    %1687 = vmatprep.subr.mxu0 0.0
    %1688 = vmatpush2.msra.mxu0 0.0
    %1689 = vmatprep.subr.mxu0 0.0
    %1690 = vmatpush2.msra.mxu0 0.0
    %1691 = vmatprep.subr.mxu0 0.0
    %1692 = vmatpush2.msra.mxu0 0.0
    %1693 = vmatprep.subr.mxu0 0.0
    %1694 = vmatpush2.msra.mxu0 0.0
    %1695 = vmatprep.subr.mxu0 0.0
    %1696 = vmatpush2.msra.mxu0 0.0
    %1697 = vmatprep.subr.mxu0 0.0
    %1698 = vmatpush2.msra.mxu0 0.0
    %1699 = vmatprep.subr.mxu0 0.0
    %1700 = vmatpush2.msra.mxu0 0.0
    %1701 = vmatprep.subr.mxu0 0.0
    %1702 = vmatpush2.msra.mxu0 0.0
    %1703 = vmatprep.mubr.f32.mxu0 0.0
    %1704 = vmatmul.mubr.f32.gmra.mxu0 %v1560
    %v1705 = vpop.f32.mrf.mxu0
    %v1706 = vadd.f32 0.0, %v1705
    %v1707 = vpop.f32.mrf.mxu0
    %v1708 = vadd.f32 0.0, %v1707
    %1709 = vdwg.mxu0
    %v1710 = vadd.f32 %v1564, %v1635
    %v1711 = vadd.f32 %v1565, %v1637
    %v1712 = vadd.f32 %v1566, %v1706
    %v1713 = vadd.f32 %v1567, %v1708
    %v1714 = vadd.f32 %v1710, %v611
    %v1715 = vadd.f32 %v1711, %v615
    %v1716 = vadd.f32 %v1712, %v619
    %v1717 = vadd.f32 %v1713, %v623
    %v1718 = vxor.u32 %v1714, 2147483648
    %v1719 = vmul.f32 %v1718, 1.442695
    %v1720 = vpow.pop %v1719
    %v1721 = vadd.f32 %v1720, 1.0
    %v1722 = vrcp.pop %v1721
    %v1723 = vmul.f32 1.0, %v1722
    %v1724 = vxor.u32 %v1715, 2147483648
    %v1725 = vmul.f32 %v1724, 1.442695
    %v1726 = vpow.pop %v1725
    %v1727 = vadd.f32 %v1726, 1.0
    %v1728 = vrcp.pop %v1727
    %v1729 = vmul.f32 1.0, %v1728
    %v1730 = vtanh.pop %v1716
    %v1731 = vxor.u32 %v1717, 2147483648
    %v1732 = vmul.f32 %v1731, 1.442695
    %v1733 = vpow.pop %v1732
    %v1734 = vadd.f32 %v1733, 1.0
    %v1735 = vrcp.pop %v1734
    %v1736 = vmul.f32 1.0, %v1735
    %v1737 = vmul.f32 %v1729, %v1558
    %v1738 = vmul.f32 %v1723, %v1730
    %v1739 = vadd.f32 %v1737, %v1738
    %v1740 = vtanh.pop %v1739
    %v1741 = vmul.f32 %v1736, %v1740
    %s1742 = smul.u32 7, 4
    %s1743 = smul.addr %s1742, 8
    %s1744 = scalar_lea.vmem [#allocation2], %s1743
    %v1745 = vld [vmem:[%s1744] sm:$0xff]
    %v1746 = vld [vmem:[%s1744 + $0x8] sm:$0xff]
    %v1747 = vld [vmem:[%s1744 + $0x10] sm:$0xff]
    %v1748 = vld [vmem:[%s1744 + $0x18] sm:$0xff]
    %1749 = vmatprep.subr.mxu0 %v457
    %1750 = vmatpush1.msra.mxu0 %v456
    %1751 = vmatprep.subr.mxu0 %v453
    %1752 = vmatpush1.msra.mxu0 %v452
    %1753 = vmatprep.subr.mxu0 %v449
    %1754 = vmatpush1.msra.mxu0 %v448
    %1755 = vmatprep.subr.mxu0 %v445
    %1756 = vmatpush1.msra.mxu0 %v444
    %1757 = vmatprep.subr.mxu0 %v441
    %1758 = vmatpush1.msra.mxu0 %v440
    %1759 = vmatprep.subr.mxu0 %v437
    %1760 = vmatpush1.msra.mxu0 %v436
    %1761 = vmatprep.subr.mxu0 %v433
    %1762 = vmatpush1.msra.mxu0 %v432
    %1763 = vmatprep.subr.mxu0 %v429
    %1764 = vmatpush1.msra.mxu0 %v428
    %1765 = vmatprep.subr.mxu0 %v425
    %1766 = vmatpush1.msra.mxu0 %v424
    %1767 = vmatprep.subr.mxu0 %v421
    %1768 = vmatpush1.msra.mxu0 %v420
    %1769 = vmatprep.subr.mxu0 %v417
    %1770 = vmatpush1.msra.mxu0 %v416
    %1771 = vmatprep.subr.mxu0 %v413
    %1772 = vmatpush1.msra.mxu0 %v412
    %1773 = vmatprep.subr.mxu0 %v409
    %1774 = vmatpush1.msra.mxu0 %v408
    %1775 = vmatprep.subr.mxu0 %v405
    %1776 = vmatpush1.msra.mxu0 %v404
    %1777 = vmatprep.subr.mxu0 %v401
    %1778 = vmatpush1.msra.mxu0 %v400
    %1779 = vmatprep.subr.mxu0 %v397
    %1780 = vmatpush1.msra.mxu0 %v396
    %1781 = vmatprep.subr.mxu0 0.0
    %1782 = vmatpush2.msra.mxu0 0.0
    %1783 = vmatprep.subr.mxu0 0.0
    %1784 = vmatpush2.msra.mxu0 0.0
    %1785 = vmatprep.subr.mxu0 0.0
    %1786 = vmatpush2.msra.mxu0 0.0
    %1787 = vmatprep.subr.mxu0 0.0
    %1788 = vmatpush2.msra.mxu0 0.0
    %1789 = vmatprep.subr.mxu0 0.0
    %1790 = vmatpush2.msra.mxu0 0.0
    %1791 = vmatprep.subr.mxu0 0.0
    %1792 = vmatpush2.msra.mxu0 0.0
    %1793 = vmatprep.subr.mxu0 0.0
    %1794 = vmatpush2.msra.mxu0 0.0
    %1795 = vmatprep.subr.mxu0 0.0
    %1796 = vmatpush2.msra.mxu0 0.0
    %1797 = vmatprep.subr.mxu0 0.0
    %1798 = vmatpush2.msra.mxu0 0.0
    %1799 = vmatprep.subr.mxu0 0.0
    %1800 = vmatpush2.msra.mxu0 0.0
    %1801 = vmatprep.subr.mxu0 0.0
    %1802 = vmatpush2.msra.mxu0 0.0
    %1803 = vmatprep.subr.mxu0 0.0
    %1804 = vmatpush2.msra.mxu0 0.0
    %1805 = vmatprep.subr.mxu0 0.0
    %1806 = vmatpush2.msra.mxu0 0.0
    %1807 = vmatprep.subr.mxu0 0.0
    %1808 = vmatpush2.msra.mxu0 0.0
    %1809 = vmatprep.subr.mxu0 0.0
    %1810 = vmatpush2.msra.mxu0 0.0
    %1811 = vmatprep.subr.mxu0 0.0
    %1812 = vmatpush2.msra.mxu0 0.0
    %1813 = vmatprep.mubr.f32.mxu0 0.0
    %1814 = vmatmul.mubr.f32.gmra.mxu0 %v1741
    %v1815 = vpop.f32.mrf.mxu0
    %v1816 = vadd.f32 0.0, %v1815
    %v1817 = vpop.f32.mrf.mxu0
    %v1818 = vadd.f32 0.0, %v1817
    %1819 = vdwg.mxu0
    %1820 = vmatprep.subr.mxu0 %v459
    %1821 = vmatpush1.msra.mxu0 %v458
    %1822 = vmatprep.subr.mxu0 %v455
    %1823 = vmatpush1.msra.mxu0 %v454
    %1824 = vmatprep.subr.mxu0 %v451
    %1825 = vmatpush1.msra.mxu0 %v450
    %1826 = vmatprep.subr.mxu0 %v447
    %1827 = vmatpush1.msra.mxu0 %v446
    %1828 = vmatprep.subr.mxu0 %v443
    %1829 = vmatpush1.msra.mxu0 %v442
    %1830 = vmatprep.subr.mxu0 %v439
    %1831 = vmatpush1.msra.mxu0 %v438
    %1832 = vmatprep.subr.mxu0 %v435
    %1833 = vmatpush1.msra.mxu0 %v434
    %1834 = vmatprep.subr.mxu0 %v431
    %1835 = vmatpush1.msra.mxu0 %v430
    %1836 = vmatprep.subr.mxu0 %v427
    %1837 = vmatpush1.msra.mxu0 %v426
    %1838 = vmatprep.subr.mxu0 %v423
    %1839 = vmatpush1.msra.mxu0 %v422
    %1840 = vmatprep.subr.mxu0 %v419
    %1841 = vmatpush1.msra.mxu0 %v418
    %1842 = vmatprep.subr.mxu0 %v415
    %1843 = vmatpush1.msra.mxu0 %v414
    %1844 = vmatprep.subr.mxu0 %v411
    %1845 = vmatpush1.msra.mxu0 %v410
    %1846 = vmatprep.subr.mxu0 %v407
    %1847 = vmatpush1.msra.mxu0 %v406
    %1848 = vmatprep.subr.mxu0 %v403
    %1849 = vmatpush1.msra.mxu0 %v402
    %1850 = vmatprep.subr.mxu0 %v399
    %1851 = vmatpush1.msra.mxu0 %v398
    %1852 = vmatprep.subr.mxu0 0.0
    %1853 = vmatpush2.msra.mxu0 0.0
    %1854 = vmatprep.subr.mxu0 0.0
    %1855 = vmatpush2.msra.mxu0 0.0
    %1856 = vmatprep.subr.mxu0 0.0
    %1857 = vmatpush2.msra.mxu0 0.0
    %1858 = vmatprep.subr.mxu0 0.0
    %1859 = vmatpush2.msra.mxu0 0.0
    %1860 = vmatprep.subr.mxu0 0.0
    %1861 = vmatpush2.msra.mxu0 0.0
    %1862 = vmatprep.subr.mxu0 0.0
    %1863 = vmatpush2.msra.mxu0 0.0
    %1864 = vmatprep.subr.mxu0 0.0
    %1865 = vmatpush2.msra.mxu0 0.0
    %1866 = vmatprep.subr.mxu0 0.0
    %1867 = vmatpush2.msra.mxu0 0.0
    %1868 = vmatprep.subr.mxu0 0.0
    %1869 = vmatpush2.msra.mxu0 0.0
    %1870 = vmatprep.subr.mxu0 0.0
    %1871 = vmatpush2.msra.mxu0 0.0
    %1872 = vmatprep.subr.mxu0 0.0
    %1873 = vmatpush2.msra.mxu0 0.0
    %1874 = vmatprep.subr.mxu0 0.0
    %1875 = vmatpush2.msra.mxu0 0.0
    %1876 = vmatprep.subr.mxu0 0.0
    %1877 = vmatpush2.msra.mxu0 0.0
    %1878 = vmatprep.subr.mxu0 0.0
    %1879 = vmatpush2.msra.mxu0 0.0
    %1880 = vmatprep.subr.mxu0 0.0
    %1881 = vmatpush2.msra.mxu0 0.0
    %1882 = vmatprep.subr.mxu0 0.0
    %1883 = vmatpush2.msra.mxu0 0.0
    %1884 = vmatprep.mubr.f32.mxu0 0.0
    %1885 = vmatmul.mubr.f32.gmra.mxu0 %v1741
    %v1886 = vpop.f32.mrf.mxu0
    %v1887 = vadd.f32 0.0, %v1886
    %v1888 = vpop.f32.mrf.mxu0
    %v1889 = vadd.f32 0.0, %v1888
    %1890 = vdwg.mxu0
    %v1891 = vadd.f32 %v1745, %v1816
    %v1892 = vadd.f32 %v1746, %v1818
    %v1893 = vadd.f32 %v1747, %v1887
    %v1894 = vadd.f32 %v1748, %v1889
    %v1895 = vadd.f32 %v1891, %v611
    %v1896 = vadd.f32 %v1892, %v615
    %v1897 = vadd.f32 %v1893, %v619
    %v1898 = vadd.f32 %v1894, %v623
    %v1899 = vxor.u32 %v1895, 2147483648
    %v1900 = vmul.f32 %v1899, 1.442695
    %v1901 = vpow.pop %v1900
    %v1902 = vadd.f32 %v1901, 1.0
    %v1903 = vrcp.pop %v1902
    %v1904 = vmul.f32 1.0, %v1903
    %v1905 = vxor.u32 %v1896, 2147483648
    %v1906 = vmul.f32 %v1905, 1.442695
    %v1907 = vpow.pop %v1906
    %v1908 = vadd.f32 %v1907, 1.0
    %v1909 = vrcp.pop %v1908
    %v1910 = vmul.f32 1.0, %v1909
    %v1911 = vtanh.pop %v1897
    %v1912 = vxor.u32 %v1898, 2147483648
    %v1913 = vmul.f32 %v1912, 1.442695
    %v1914 = vpow.pop %v1913
    %v1915 = vadd.f32 %v1914, 1.0
    %v1916 = vrcp.pop %v1915
    %v1917 = vmul.f32 1.0, %v1916
    %v1918 = vmul.f32 %v1910, %v1739
    %v1919 = vmul.f32 %v1904, %v1911
    %v1920 = vadd.f32 %v1918, %v1919
    %v1921 = vtanh.pop %v1920
    %v1922 = vmul.f32 %v1917, %v1921
    %1923 = vst [vmem:[#allocation9] sm:$0xff] %v1922
    // Predicated region
    $region30: #{tpu_custom_call.1} parent=1 // pred_check
      _
    $region31: #{tpu_custom_call.1} parent=1 // pred_check_branch
      %1925 = sbr.rel (0) target = $region33
    $region32: #{tpu_custom_call.1} parent=1 // pred_region
      %s1927 = ssub.s32 128, 128
      %1928 = vsyncadd [#allocation5], %s1927
      %s1930 = sshll.u32 [#allocation9], 4
      %s1931 = int_to_ptr.vmem [resolvable:$true] %s1930
      %1933 = dma.vmem_to_hbm [thread:$0]  %s1931, 128, %s4, [#allocation5]
    $region33: #{tpu_custom_call.1} parent=1 // pred_fallthru
      _
    // Predicated region
    $region34: #{tpu_custom_call.1} parent=1 // pred_check
      _
    $region35: #{tpu_custom_call.1} parent=1 // pred_check_branch
      %1935 = sbr.rel (0) target = $region37
    $region36: #{tpu_custom_call.1} parent=1 // pred_region
      %1936 = dma.done [#allocation5], 128
    $region37: #{tpu_custom_call.1} parent=1 // pred_fallthru
      _
    %1937 = vsyncpa [#allocation4], 1
    %1938 = vsyncpa [#allocation7], 1
    %1939 = vsyncpa [#allocation5], 1

</llo_original>
